<compile_context>
chip_gen: v7x
topology: tpu7x:2x2x1
jax: 0.10.0
libtpu: 0.0.40
codegen_flags: <defaults>
</compile_context>

<pallas_src>
import functools

import jax
import jax.numpy as jnp
from jax.experimental import pallas as pl
from jax.experimental.pallas import tpu as pltpu


# --------------------------------------------------------------------------------
# HyperNet: three 1x1 convolutions == per-pixel MLP (one fused kernel, called once).
# --------------------------------------------------------------------------------
def _hypernet_kernel(x_ref, w1_ref, b1_ref, w2_ref, b2_ref, w3_ref, b3_ref, o_ref):
    x = x_ref[...]                                                        # (M, Cin)
    h = jnp.dot(x, w1_ref[...], preferred_element_type=jnp.float32) + b1_ref[...]
    h = jnp.maximum(h, 0.0)                                               # ReLU
    h = jnp.dot(h, w2_ref[...], preferred_element_type=jnp.float32) + b2_ref[...]
    h = jnp.maximum(h, 0.0)                                               # ReLU
    o = jnp.dot(h, w3_ref[...], preferred_element_type=jnp.float32) + b3_ref[...]
    # numerically-stable softplus, then + 1e-7 (matches HyperNet.forward)
    o = jnp.maximum(o, 0.0) + jnp.log1p(jnp.exp(-jnp.abs(o)))
    o_ref[...] = o + 1e-7


def hypernet_apply(x_nchw, params):
    """x_nchw: (B, 4, H, W) float32 -> (B, out_nc, H, W)."""
    B, C, H, W = x_nchw.shape
    x_flat = jnp.transpose(x_nchw, (0, 2, 3, 1)).reshape(B * H * W, C)
    M = x_flat.shape[0]
    Mp = max(8, ((M + 7) // 8) * 8)                     # pad rows to sublane multiple
    x_pad = jnp.zeros((Mp, C), jnp.float32).at[:M].set(x_flat)
    w1, b1, w2, b2, w3, b3 = params
    out_c = w3.shape[1]
    vmem = pl.BlockSpec(memory_space=pltpu.MemorySpace.VMEM)
    out = pl.pallas_call(
        _hypernet_kernel,
        out_shape=jax.ShapeDtypeStruct((Mp, out_c), jnp.float32),
        in_specs=[vmem] * 7,
        out_specs=vmem,
    )(x_pad, w1, b1, w2, b2, w3, b3)
    out = out[:M].reshape(B, H, W, out_c).transpose(0, 3, 1, 2)
    return out


# --------------------------------------------------------------------------------
# Tile selection: rows of each sf x sf sub-block (sublane axis), full width in lanes.
# --------------------------------------------------------------------------------
def _pick_hs_tile(Hs, C, W, Ws, budget_bytes=6 * 1024 * 1024):
    """Row tile (multiple of 8 dividing Hs) keeping the double-buffered VMEM
    footprint (with lane padding to 128) well under every generation's scoped-VMEM
    default (16 MiB v5e, 32 MiB v6e/v7x)."""
    lanes_w = max(128, -(-W // 128) * 128)
    lanes_ws = max(128, -(-Ws // 128) * 128)
    # padded f32 bytes per row of tile, double-buffered, incl. in-kernel temporaries
    per_row = 8 * (2 * C * lanes_w        # FR / FX tile
                   + 2 * lanes_w          # FK tile
                   + lanes_ws             # F2K block-mean tile
                   + 2 * C * lanes_ws     # d tile
                   + 4 * C * lanes_w)     # complex-product temporaries
    cand = [t for t in range(8, Hs + 1, 8) if Hs % t == 0]
    if not cand:
        # TODO(synk): Hs not a multiple of 8 — fall back to a single full-Hs tile
        # (may hit the (8,128) block-shape rule on exotic sizes).
        return Hs
    fit = [t for t in cand if t * per_row <= budget_bytes]
    t = fit[-1] if fit else cand[0]
    # keep >= 2 row tiles per sub-block when possible (DMA overlap / v7x megacore)
    if t == Hs:
        halves = [c for c in cand if c * 2 <= Hs]
        if halves:
            t = halves[-1]
    return t


# --------------------------------------------------------------------------------
# Pass 1: d = splits_and_mean(FK * FR, sf) / (splits_and_mean(F2K, sf) + alpha)
#   grid = (B, Hs/hs_t, sf);  innermost axis = sf row-blocks (reduction, arbitrary)
#   column-blocks are reduced in-kernel by lane-chunk adds; FK*FR fused in.
# --------------------------------------------------------------------------------
def _dmean_kernel(alpha_ref, fr_ref, fk_ref, f2km_ref, d_ref, *, sf, ws):
    b = pl.program_id(0)
    i = pl.program_id(2)                       # row-block index (reduction axis)

    @pl.when(i == 0)
    def _init():
        d_ref[...] = jnp.zeros_like(d_ref)

    fr_r = fr_ref[0, 0]                        # (C, hs_t, W)
    fr_i = fr_ref[0, 1]
    fk_r = fk_ref[0, 0, 0]                     # (hs_t, W), broadcasts over C
    fk_i = fk_ref[0, 1, 0]

    # FK * FR for row-block i, all sf column blocks at once (full lane width).
    pr = fk_r * fr_r - fk_i * fr_i             # (C, hs_t, W)
    pi = fk_r * fr_i + fk_i * fr_r

    # Column-block (j) part of splits_and_mean: add the sf lane chunks together.
    acc_r = pr[..., 0:ws]
    acc_i = pi[..., 0:ws]
    for j in range(1, sf):
        acc_r = acc_r + pr[..., j * ws:(j + 1) * ws]
        acc_i = acc_i + pi[..., j * ws:(j + 1) * ws]

    d_ref[0, 0] += acc_r                       # row-block (i) part of the mean
    d_ref[0, 1] += acc_i

    @pl.when(i == sf - 1)
    def _finalize():
        alpha = alpha_ref[b]
        # d = (sum / (sf*sf)) / (blockmean(F2K) + alpha); exact divide — alpha can
        # be ~1e-7 and the result is amplified by (1+alpha)/alpha downstream.
        inv = 1.0 / ((f2km_ref[0, 0] + alpha) * float(sf * sf))
        d_ref[0, 0] *= inv
        d_ref[0, 1] *= inv


# --------------------------------------------------------------------------------
# Pass 2: FX = (FR - conj(FK) * repeat(d, sf, sf)) * (1 + alpha) / alpha
# --------------------------------------------------------------------------------
def _fx_kernel(alpha_ref, fr_ref, fk_ref, d_ref, fx_ref, *, sf):
    b = pl.program_id(0)
    alpha = alpha_ref[b]
    scale = (1.0 + alpha) / alpha              # (1+alpha) of the final scaling folded in

    fk_r = fk_ref[0, 0, 0]                     # (hs_t, W)
    fk_i = fk_ref[0, 1, 0]
    # repeat(1,1,sf,sf): this row tile already matches d's within-block rows;
    # tile d across the sf column blocks along the lane axis.
    d_r = jnp.concatenate([d_ref[0, 0]] * sf, axis=-1)    # (C, hs_t, W)
    d_i = jnp.concatenate([d_ref[0, 1]] * sf, axis=-1)

    # P = conj(FK) * repeat(d)
    p_r = fk_r * d_r + fk_i * d_i
    p_i = fk_r * d_i - fk_i * d_r

    fx_ref[0, 0] = (fr_ref[0, 0] - p_r) * scale
    fx_ref[0, 1] = (fr_ref[0, 1] - p_i) * scale


def datanet_apply(x, fk_ri, f2k_m, FCKFSHy, alpha, sf, inv_mask):
    # TODO(synk): reference promotes to float64/complex128; TPU computes f32/complex64.
    B, C, H, W = x.shape
    Hs, Ws = H // sf, W // sf

    FR = FCKFSHy + jnp.fft.fft2(alpha[:, None, None, None] * x)
    fr_ri = jnp.stack([jnp.real(FR), jnp.imag(FR)], axis=1).astype(jnp.float32)  # (B,2,C,H,W)

    hs_t = _pick_hs_tile(Hs, C, W, Ws)
    n_ht = Hs // hs_t

    fr_spec = pl.BlockSpec((1, 2, C, hs_t, W), lambda b, t, i, a: (b, 0, 0, i * n_ht + t, 0))
    fk_spec = pl.BlockSpec((1, 2, 1, hs_t, W), lambda b, t, i, a: (b, 0, 0, i * n_ht + t, 0))
    f2_spec = pl.BlockSpec((1, 1, hs_t, Ws), lambda b, t, i, a: (b, 0, t, 0))
    d_spec = pl.BlockSpec((1, 2, C, hs_t, Ws), lambda b, t, i, a: (b, 0, 0, t, 0))

    vmem_limit = 32 * 1024 * 1024   # tiles sized well below this; safe on v5e/v6e/v7x

    # Pass 1: block-mean ratio d  (reduction over the sf row-blocks).
    d_ri = pl.pallas_call(
        functools.partial(_dmean_kernel, sf=sf, ws=Ws),
        grid_spec=pltpu.PrefetchScalarGridSpec(
            num_scalar_prefetch=1,                      # alpha -> SMEM
            grid=(B, n_ht, sf),
            in_specs=[fr_spec, fk_spec, f2_spec],
            out_specs=d_spec),
        out_shape=jax.ShapeDtypeStruct((B, 2, C, Hs, Ws), jnp.float32),
        compiler_params=pltpu.CompilerParams(
            dimension_semantics=("parallel", "parallel", "arbitrary"),
            vmem_limit_bytes=vmem_limit),
    )(alpha.astype(jnp.float32), fr_ri, fk_ri, f2k_m)

    # Pass 2: FX (with the (1+alpha) factor folded in).
    fx_ri = pl.pallas_call(
        functools.partial(_fx_kernel, sf=sf),
        grid_spec=pltpu.PrefetchScalarGridSpec(
            num_scalar_prefetch=1,
            grid=(B, n_ht, sf),
            in_specs=[fr_spec, fk_spec, d_spec],
            out_specs=fr_spec),
        out_shape=jax.ShapeDtypeStruct((B, 2, C, H, W), jnp.float32),
        compiler_params=pltpu.CompilerParams(
            dimension_semantics=("parallel", "parallel", "parallel"),
            vmem_limit_bytes=vmem_limit),
    )(alpha.astype(jnp.float32), fr_ri, fk_ri, d_ri)

    FX = fx_ri[:, 0] + 1j * fx_ri[:, 1]
    x_new = jnp.real(jnp.fft.ifft2(FX)).astype(jnp.float32)
    # (1 + alpha) already folded into FX inside the kernel; remaining factor only.
    return x_new * inv_mask


# --------------------------------------------------------------------------------
# defaultnet glue (plain JAX): frequency prep + iteration loop.
# --------------------------------------------------------------------------------
def prepare_frequency_components(k, R_img, L_img, sf):
    B, C, H, W = R_img.shape
    Hs, Ws = H // sf, W // sf
    FK = jnp.fft.fft2(k.astype(jnp.float32), s=(H, W))            # (B,1,H,W) complex64
    F2K = (jnp.abs(FK) ** 2).astype(jnp.float32)
    SHy = jnp.zeros_like(R_img)
    SHy = SHy.at[..., 0::sf, 0::sf].set(L_img)
    FCKFSHy = jnp.conj(FK) * jnp.fft.fft2(SHy.astype(jnp.float32))

    # Loop-invariant, kernel-ready arrays (computed once):
    fk_ri = jnp.stack([jnp.real(FK), jnp.imag(FK)], axis=1).astype(jnp.float32)  # (B,2,1,H,W)
    f2k_m = F2K.reshape(B, 1, sf, Hs, sf, Ws).mean(axis=(2, 4)).astype(jnp.float32)  # (B,1,Hs,Ws)
    return fk_ri, f2k_m, FCKFSHy


@functools.partial(jax.jit, static_argnames=("sf", "sr", "typ", "iter_num"))
def defaultnet_forward(R_img, L_img, k, sigma, mask, hyper_params, *,
                       sf, sr, typ, iter_num):
    fk_ri, f2k_m, FCKFSHy = prepare_frequency_components(k, R_img, L_img, sf)
    inv_mask = 1.0 / (1.0 + mask.astype(jnp.float32))              # loop-invariant

    # HyperNet inputs are loop-invariant -> run it exactly once (hoisted).
    sf_t = jnp.full_like(sigma, float(sf))
    sr_t = jnp.full_like(sigma, float(sr))
    type_t = jnp.full_like(sigma, float(typ))
    h_in = jnp.concatenate([sigma, sf_t, sr_t, type_t], axis=1)    # (B,4,1,1)
    ab = hypernet_apply(h_in, hyper_params)                        # (B,2*iter_num,1,1)

    x = R_img
    for i in range(iter_num):
        alpha = ab[:, i, 0, 0]                                     # (B,)
        x = datanet_apply(x, fk_ri, f2k_m, FCKFSHy, alpha, sf, inv_mask)
        # TODO(synk): ResUNet (self.p) source is not provided in the module; its
        # refinement step is skipped (identity), so ab[:, iter_num + i] is unused.
    return x


# --------------------------------------------------------------------------------
if __name__ == "__main__":
    key = jax.random.PRNGKey(0)
    ks = jax.random.split(key, 12)

    B, C = 2, 3
    H = W = 16
    sf = 2
    iter_num = 2
    sr, typ = 2.0, 1.0

    R_img = jax.random.normal(ks[0], (B, C, H, W), jnp.float32)
    L_img = jax.random.normal(ks[1], (B, C, H // sf, W // sf), jnp.float32)
    kker = jax.nn.softmax(jax.random.normal(ks[2], (B, 1, 5 * 5)), axis=-1).reshape(B, 1, 5, 5)
    sigma = jnp.abs(jax.random.normal(ks[3], (B, 1, 1, 1), jnp.float32)) * 0.1
    mask = jnp.abs(jax.random.normal(ks[4], (B, 1, H, W), jnp.float32))

    # HyperNet params: Conv2d(4->64,1x1), Conv2d(64->64,1x1), Conv2d(64->2*iter_num,1x1)
    channel, in_nc, out_nc = 64, 4, 2 * iter_num
    hyper_params = (
        0.1 * jax.random.normal(ks[5], (in_nc, channel), jnp.float32),
        0.1 * jax.random.normal(ks[6], (1, channel), jnp.float32),
        0.1 * jax.random.normal(ks[7], (channel, channel), jnp.float32),
        0.1 * jax.random.normal(ks[8], (1, channel), jnp.float32),
        0.1 * jax.random.normal(ks[9], (channel, out_nc), jnp.float32),
        0.1 * jax.random.normal(ks[10], (1, out_nc), jnp.float32),
    )

    out = defaultnet_forward(R_img, L_img, kker, sigma, mask, hyper_params,
                             sf=sf, sr=sr, typ=typ, iter_num=iter_num)
    out = jax.block_until_ready(out)
    assert out.shape == (B, C, H, W) and out.dtype == jnp.float32
    print("KERNEL_OK")
</pallas_src>

<mosaic_0001>
module attributes {stable_mosaic.version = 11 : i64} {
  func.func @_hypernet_kernel(%arg0: memref<8x4xf32, #tpu.memory_space<vmem>>, %arg1: memref<4x64xf32, #tpu.memory_space<vmem>>, %arg2: memref<1x64xf32, #tpu.memory_space<vmem>>, %arg3: memref<64x64xf32, #tpu.memory_space<vmem>>, %arg4: memref<1x64xf32, #tpu.memory_space<vmem>>, %arg5: memref<64x4xf32, #tpu.memory_space<vmem>>, %arg6: memref<1x4xf32, #tpu.memory_space<vmem>>, %arg7: memref<8x4xf32, #tpu.memory_space<vmem>>) attributes {dimension_semantics = [], scalar_prefetch = 0 : i64, scratch_operands = 0 : i64, tpu.core_type = #tpu.core_type<tc>} {
    %c0 = arith.constant 0 : index
    %c0_0 = arith.constant 0 : index
    %0 = vector.load %arg0[%c0, %c0_0] : memref<8x4xf32, #tpu.memory_space<vmem>>, vector<8x4xf32>
    %c0_1 = arith.constant 0 : index
    %c0_2 = arith.constant 0 : index
    %1 = vector.load %arg1[%c0_1, %c0_2] : memref<4x64xf32, #tpu.memory_space<vmem>>, vector<4x64xf32>
    %cst = arith.constant dense<0.000000e+00> : vector<8x64xf32>
    %2 = tpu.matmul %0, %1, %cst {dimension_numbers = #tpu.dot_dimension_numbers<[1], [0], [0], [1], [0, 0, 1, 1], [], []>} : vector<8x4xf32>, vector<4x64xf32>, vector<8x64xf32> -> vector<8x64xf32>
    %c0_3 = arith.constant 0 : index
    %c0_4 = arith.constant 0 : index
    %3 = vector.load %arg2[%c0_3, %c0_4] : memref<1x64xf32, #tpu.memory_space<vmem>>, vector<1x64xf32>
    %4 = vector.broadcast %3 : vector<1x64xf32> to vector<8x64xf32>
    %5 = arith.addf %2, %4 : vector<8x64xf32>
    %cst_5 = arith.constant 0.000000e+00 : f32
    %6 = vector.broadcast %cst_5 : f32 to vector<8x64xf32>
    %7 = arith.maximumf %5, %6 : vector<8x64xf32>
    %c0_6 = arith.constant 0 : index
    %c0_7 = arith.constant 0 : index
    %8 = vector.load %arg3[%c0_6, %c0_7] : memref<64x64xf32, #tpu.memory_space<vmem>>, vector<64x64xf32>
    %cst_8 = arith.constant dense<0.000000e+00> : vector<8x64xf32>
    %9 = tpu.matmul %7, %8, %cst_8 {dimension_numbers = #tpu.dot_dimension_numbers<[1], [0], [0], [1], [0, 0, 1, 1], [], []>} : vector<8x64xf32>, vector<64x64xf32>, vector<8x64xf32> -> vector<8x64xf32>
    %c0_9 = arith.constant 0 : index
    %c0_10 = arith.constant 0 : index
    %10 = vector.load %arg4[%c0_9, %c0_10] : memref<1x64xf32, #tpu.memory_space<vmem>>, vector<1x64xf32>
    %11 = vector.broadcast %10 : vector<1x64xf32> to vector<8x64xf32>
    %12 = arith.addf %9, %11 : vector<8x64xf32>
    %cst_11 = arith.constant 0.000000e+00 : f32
    %13 = vector.broadcast %cst_11 : f32 to vector<8x64xf32>
    %14 = arith.maximumf %12, %13 : vector<8x64xf32>
    %c0_12 = arith.constant 0 : index
    %c0_13 = arith.constant 0 : index
    %15 = vector.load %arg5[%c0_12, %c0_13] : memref<64x4xf32, #tpu.memory_space<vmem>>, vector<64x4xf32>
    %cst_14 = arith.constant dense<0.000000e+00> : vector<8x4xf32>
    %16 = tpu.matmul %14, %15, %cst_14 {dimension_numbers = #tpu.dot_dimension_numbers<[1], [0], [0], [1], [0, 0, 1, 1], [], []>} : vector<8x64xf32>, vector<64x4xf32>, vector<8x4xf32> -> vector<8x4xf32>
    %c0_15 = arith.constant 0 : index
    %c0_16 = arith.constant 0 : index
    %17 = vector.load %arg6[%c0_15, %c0_16] : memref<1x4xf32, #tpu.memory_space<vmem>>, vector<1x4xf32>
    %18 = vector.broadcast %17 : vector<1x4xf32> to vector<8x4xf32>
    %19 = arith.addf %16, %18 : vector<8x4xf32>
    %cst_17 = arith.constant 0.000000e+00 : f32
    %20 = vector.broadcast %cst_17 : f32 to vector<8x4xf32>
    %21 = arith.maximumf %19, %20 : vector<8x4xf32>
    %22 = math.absf %19 : vector<8x4xf32>
    %cst_18 = arith.constant 0.000000e+00 : f32
    %23 = vector.broadcast %cst_18 : f32 to vector<8x4xf32>
    %24 = arith.subf %23, %22 : vector<8x4xf32>
    %25 = math.exp %24 : vector<8x4xf32>
    %26 = math.log1p %25 : vector<8x4xf32>
    %27 = arith.addf %21, %26 : vector<8x4xf32>
    %cst_19 = arith.constant 1.000000e-07 : f32
    %28 = vector.broadcast %cst_19 : f32 to vector<8x4xf32>
    %29 = arith.addf %27, %28 : vector<8x4xf32>
    %c0_20 = arith.constant 0 : index
    %c0_21 = arith.constant 0 : index
    %30 = vector.load %arg7[%c0_20, %c0_21] : memref<8x4xf32, #tpu.memory_space<vmem>>, vector<8x4xf32>
    tpu.vector_store %arg7[%c0_20, %c0_21], %29 {strides = array<i32>} : memref<8x4xf32, #tpu.memory_space<vmem>>, vector<8x4xf32>,
    return
  }
}

module attributes {stable_mosaic.version = 11 : i64} {
  func.func @_dmean_kernel(%arg0: i32, %arg1: i32, %arg2: i32, %arg3: memref<2xf32, #tpu.memory_space<smem>>, %arg4: memref<1x2x3x8x16xf32, #tpu.memory_space<vmem>>, %arg5: memref<1x2x1x8x16xf32, #tpu.memory_space<vmem>>, %arg6: memref<1x1x8x8xf32, #tpu.memory_space<vmem>>, %arg7: memref<1x2x3x8x8xf32, #tpu.memory_space<vmem>>) attributes {dimension_semantics = [#tpu.dimension_semantics<parallel>, #tpu.dimension_semantics<parallel>, #tpu.dimension_semantics<arbitrary>], iteration_bounds = array<i64: 2, 1, 2>, scalar_prefetch = 1 : i64, scratch_operands = 0 : i64, tpu.core_type = #tpu.core_type<tc>, window_params = [{transform_indices = @transform_0, window_bounds = array<i64: 1, 2, 3, 8, 16>}, {transform_indices = @transform_1, window_bounds = array<i64: 1, 2, 1, 8, 16>}, {transform_indices = @transform_2, window_bounds = array<i64: 1, 1, 8, 8>}, {transform_indices = @transform_3, window_bounds = array<i64: 1, 2, 3, 8, 8>}]} {
    %c0_i32 = arith.constant 0 : i32
    %0 = arith.cmpi eq, %arg2, %c0_i32 : i32
    %1 = arith.extui %0 : i1 to i32
    %c0_i32_0 = arith.constant 0 : i32
    %2 = arith.cmpi ne, %1, %c0_i32_0 : i32
    scf.if %2 {
      %cst = arith.constant 0.000000e+00 : f32
      %46 = vector.broadcast %cst : f32 to vector<1x2x3x8x8xf32>
      %c0_40 = arith.constant 0 : index
      %c0_41 = arith.constant 0 : index
      %c0_42 = arith.constant 0 : index
      %c0_43 = arith.constant 0 : index
      %c0_44 = arith.constant 0 : index
      %47 = vector.load %arg7[%c0_40, %c0_41, %c0_42, %c0_43, %c0_44] : memref<1x2x3x8x8xf32, #tpu.memory_space<vmem>>, vector<1x2x3x8x8xf32>
      tpu.vector_store %arg7[%c0_40, %c0_41, %c0_42, %c0_43, %c0_44], %46 {strides = array<i32>} : memref<1x2x3x8x8xf32, #tpu.memory_space<vmem>>, vector<1x2x3x8x8xf32>,
    } else {
    }
    %c0 = arith.constant 0 : index
    %c0_1 = arith.constant 0 : index
    %c0_2 = arith.constant 0 : index
    %c0_3 = arith.constant 0 : index
    %c0_4 = arith.constant 0 : index
    %3 = vector.load %arg4[%c0, %c0_1, %c0_2, %c0_3, %c0_4] : memref<1x2x3x8x16xf32, #tpu.memory_space<vmem>>, vector<1x1x3x8x16xf32>
    %4 = vector.shape_cast %3 : vector<1x1x3x8x16xf32> to vector<3x8x16xf32>
    %c0_5 = arith.constant 0 : index
    %c1 = arith.constant 1 : index
    %c0_6 = arith.constant 0 : index
    %c0_7 = arith.constant 0 : index
    %c0_8 = arith.constant 0 : index
    %5 = vector.load %arg4[%c0_5, %c1, %c0_6, %c0_7, %c0_8] : memref<1x2x3x8x16xf32, #tpu.memory_space<vmem>>, vector<1x1x3x8x16xf32>
    %6 = vector.shape_cast %5 : vector<1x1x3x8x16xf32> to vector<3x8x16xf32>
    %c0_9 = arith.constant 0 : index
    %c0_10 = arith.constant 0 : index
    %c0_11 = arith.constant 0 : index
    %c0_12 = arith.constant 0 : index
    %c0_13 = arith.constant 0 : index
    %7 = vector.load %arg5[%c0_9, %c0_10, %c0_11, %c0_12, %c0_13] : memref<1x2x1x8x16xf32, #tpu.memory_space<vmem>>, vector<1x1x1x8x16xf32>
    %8 = vector.shape_cast %7 : vector<1x1x1x8x16xf32> to vector<8x16xf32>
    %c0_14 = arith.constant 0 : index
    %c1_15 = arith.constant 1 : index
    %c0_16 = arith.constant 0 : index
    %c0_17 = arith.constant 0 : index
    %c0_18 = arith.constant 0 : index
    %9 = vector.load %arg5[%c0_14, %c1_15, %c0_16, %c0_17, %c0_18] : memref<1x2x1x8x16xf32, #tpu.memory_space<vmem>>, vector<1x1x1x8x16xf32>
    %10 = vector.shape_cast %9 : vector<1x1x1x8x16xf32> to vector<8x16xf32>
    %11 = vector.shape_cast %8 : vector<8x16xf32> to vector<1x8x16xf32>
    %12 = vector.broadcast %11 : vector<1x8x16xf32> to vector<3x8x16xf32>
    %13 = arith.mulf %12, %4 : vector<3x8x16xf32>
    %14 = vector.shape_cast %10 : vector<8x16xf32> to vector<1x8x16xf32>
    %15 = vector.broadcast %14 : vector<1x8x16xf32> to vector<3x8x16xf32>
    %16 = arith.mulf %15, %6 : vector<3x8x16xf32>
    %17 = arith.subf %13, %16 : vector<3x8x16xf32>
    %18 = vector.shape_cast %8 : vector<8x16xf32> to vector<1x8x16xf32>
    %19 = vector.broadcast %18 : vector<1x8x16xf32> to vector<3x8x16xf32>
    %20 = arith.mulf %19, %6 : vector<3x8x16xf32>
    %21 = vector.shape_cast %10 : vector<8x16xf32> to vector<1x8x16xf32>
    %22 = vector.broadcast %21 : vector<1x8x16xf32> to vector<3x8x16xf32>
    %23 = arith.mulf %22, %4 : vector<3x8x16xf32>
    %24 = arith.addf %20, %23 : vector<3x8x16xf32>
    %25 = vector.extract_strided_slice %17 {offsets = [0, 0, 0], sizes = [3, 8, 8], strides = [1, 1, 1]} : vector<3x8x16xf32> to vector<3x8x8xf32>
    %26 = vector.extract_strided_slice %24 {offsets = [0, 0, 0], sizes = [3, 8, 8], strides = [1, 1, 1]} : vector<3x8x16xf32> to vector<3x8x8xf32>
    %27 = vector.extract_strided_slice %17 {offsets = [0, 0, 8], sizes = [3, 8, 8], strides = [1, 1, 1]} : vector<3x8x16xf32> to vector<3x8x8xf32>
    %28 = arith.addf %25, %27 : vector<3x8x8xf32>
    %29 = vector.extract_strided_slice %24 {offsets = [0, 0, 8], sizes = [3, 8, 8], strides = [1, 1, 1]} : vector<3x8x16xf32> to vector<3x8x8xf32>
    %30 = arith.addf %26, %29 : vector<3x8x8xf32>
    %c0_19 = arith.constant 0 : index
    %c0_20 = arith.constant 0 : index
    %c0_21 = arith.constant 0 : index
    %c0_22 = arith.constant 0 : index
    %c0_23 = arith.constant 0 : index
    %31 = vector.load %arg7[%c0_19, %c0_20, %c0_21, %c0_22, %c0_23] : memref<1x2x3x8x8xf32, #tpu.memory_space<vmem>>, vector<1x1x3x8x8xf32>
    %32 = vector.shape_cast %31 : vector<1x1x3x8x8xf32> to vector<3x8x8xf32>
    %33 = arith.addf %32, %28 : vector<3x8x8xf32>
    %c0_24 = arith.constant 0 : index
    %c0_25 = arith.constant 0 : index
    %c0_26 = arith.constant 0 : index
    %c0_27 = arith.constant 0 : index
    %c0_28 = arith.constant 0 : index
    %34 = vector.load %arg7[%c0_24, %c0_25, %c0_26, %c0_27, %c0_28] : memref<1x2x3x8x8xf32, #tpu.memory_space<vmem>>, vector<1x1x3x8x8xf32>
    %35 = vector.shape_cast %34 : vector<1x1x3x8x8xf32> to vector<3x8x8xf32>
    %36 = vector.shape_cast %33 : vector<3x8x8xf32> to vector<1x1x3x8x8xf32>
    tpu.vector_store %arg7[%c0_24, %c0_25, %c0_26, %c0_27, %c0_28], %36 {strides = array<i32>} : memref<1x2x3x8x8xf32, #tpu.memory_space<vmem>>, vector<1x1x3x8x8xf32>,
    %c0_29 = arith.constant 0 : index
    %c1_30 = arith.constant 1 : index
    %c0_31 = arith.constant 0 : index
    %c0_32 = arith.constant 0 : index
    %c0_33 = arith.constant 0 : index
    %37 = vector.load %arg7[%c0_29, %c1_30, %c0_31, %c0_32, %c0_33] : memref<1x2x3x8x8xf32, #tpu.memory_space<vmem>>, vector<1x1x3x8x8xf32>
    %38 = vector.shape_cast %37 : vector<1x1x3x8x8xf32> to vector<3x8x8xf32>
    %39 = arith.addf %38, %30 : vector<3x8x8xf32>
    %c0_34 = arith.constant 0 : index
    %c1_35 = arith.constant 1 : index
    %c0_36 = arith.constant 0 : index
    %c0_37 = arith.constant 0 : index
    %c0_38 = arith.constant 0 : index
    %40 = vector.load %arg7[%c0_34, %c1_35, %c0_36, %c0_37, %c0_38] : memref<1x2x3x8x8xf32, #tpu.memory_space<vmem>>, vector<1x1x3x8x8xf32>
    %41 = vector.shape_cast %40 : vector<1x1x3x8x8xf32> to vector<3x8x8xf32>
    %42 = vector.shape_cast %39 : vector<3x8x8xf32> to vector<1x1x3x8x8xf32>
    tpu.vector_store %arg7[%c0_34, %c1_35, %c0_36, %c0_37, %c0_38], %42 {strides = array<i32>} : memref<1x2x3x8x8xf32, #tpu.memory_space<vmem>>, vector<1x1x3x8x8xf32>,
    %c1_i32 = arith.constant 1 : i32
    %43 = arith.cmpi eq, %arg2, %c1_i32 : i32
    %44 = arith.extui %43 : i1 to i32
    %c0_i32_39 = arith.constant 0 : i32
    %45 = arith.cmpi ne, %44, %c0_i32_39 : i32
    scf.if %45 {
      %46 = arith.index_cast %arg0 : i32 to index
      %47 = memref.load %arg3[%46] : memref<2xf32, #tpu.memory_space<smem>>
      %c0_40 = arith.constant 0 : index
      %c0_41 = arith.constant 0 : index
      %c0_42 = arith.constant 0 : index
      %c0_43 = arith.constant 0 : index
      %48 = vector.load %arg6[%c0_40, %c0_41, %c0_42, %c0_43] : memref<1x1x8x8xf32, #tpu.memory_space<vmem>>, vector<1x1x8x8xf32>
      %49 = vector.shape_cast %48 : vector<1x1x8x8xf32> to vector<8x8xf32>
      %50 = vector.broadcast %47 : f32 to vector<8x8xf32>
      %51 = arith.addf %49, %50 : vector<8x8xf32>
      %cst = arith.constant 4.000000e+00 : f32
      %52 = vector.broadcast %cst : f32 to vector<8x8xf32>
      %53 = arith.mulf %51, %52 : vector<8x8xf32>
      %cst_44 = arith.constant 1.000000e+00 : f32
      %54 = vector.broadcast %cst_44 : f32 to vector<8x8xf32>
      %55 = arith.divf %54, %53 : vector<8x8xf32>
      %c0_45 = arith.constant 0 : index
      %c0_46 = arith.constant 0 : index
      %c0_47 = arith.constant 0 : index
      %c0_48 = arith.constant 0 : index
      %c0_49 = arith.constant 0 : index
      %56 = vector.load %arg7[%c0_45, %c0_46, %c0_47, %c0_48, %c0_49] : memref<1x2x3x8x8xf32, #tpu.memory_space<vmem>>, vector<1x1x3x8x8xf32>
      %57 = vector.shape_cast %56 : vector<1x1x3x8x8xf32> to vector<3x8x8xf32>
      %58 = vector.shape_cast %55 : vector<8x8xf32> to vector<1x8x8xf32>
      %59 = vector.broadcast %58 : vector<1x8x8xf32> to vector<3x8x8xf32>
      %60 = arith.mulf %57, %59 : vector<3x8x8xf32>
      %c0_50 = arith.constant 0 : index
      %c0_51 = arith.constant 0 : index
      %c0_52 = arith.constant 0 : index
      %c0_53 = arith.constant 0 : index
      %c0_54 = arith.constant 0 : index
      %61 = vector.load %arg7[%c0_50, %c0_51, %c0_52, %c0_53, %c0_54] : memref<1x2x3x8x8xf32, #tpu.memory_space<vmem>>, vector<1x1x3x8x8xf32>
      %62 = vector.shape_cast %61 : vector<1x1x3x8x8xf32> to vector<3x8x8xf32>
      %63 = vector.shape_cast %60 : vector<3x8x8xf32> to vector<1x1x3x8x8xf32>
      tpu.vector_store %arg7[%c0_50, %c0_51, %c0_52, %c0_53, %c0_54], %63 {strides = array<i32>} : memref<1x2x3x8x8xf32, #tpu.memory_space<vmem>>, vector<1x1x3x8x8xf32>,
      %c0_55 = arith.constant 0 : index
      %c1_56 = arith.constant 1 : index
      %c0_57 = arith.constant 0 : index
      %c0_58 = arith.constant 0 : index
      %c0_59 = arith.constant 0 : index
      %64 = vector.load %arg7[%c0_55, %c1_56, %c0_57, %c0_58, %c0_59] : memref<1x2x3x8x8xf32, #tpu.memory_space<vmem>>, vector<1x1x3x8x8xf32>
      %65 = vector.shape_cast %64 : vector<1x1x3x8x8xf32> to vector<3x8x8xf32>
      %66 = vector.shape_cast %55 : vector<8x8xf32> to vector<1x8x8xf32>
      %67 = vector.broadcast %66 : vector<1x8x8xf32> to vector<3x8x8xf32>
      %68 = arith.mulf %65, %67 : vector<3x8x8xf32>
      %c0_60 = arith.constant 0 : index
      %c1_61 = arith.constant 1 : index
      %c0_62 = arith.constant 0 : index
      %c0_63 = arith.constant 0 : index
      %c0_64 = arith.constant 0 : index
      %69 = vector.load %arg7[%c0_60, %c1_61, %c0_62, %c0_63, %c0_64] : memref<1x2x3x8x8xf32, #tpu.memory_space<vmem>>, vector<1x1x3x8x8xf32>
      %70 = vector.shape_cast %69 : vector<1x1x3x8x8xf32> to vector<3x8x8xf32>
      %71 = vector.shape_cast %68 : vector<3x8x8xf32> to vector<1x1x3x8x8xf32>
      tpu.vector_store %arg7[%c0_60, %c1_61, %c0_62, %c0_63, %c0_64], %71 {strides = array<i32>} : memref<1x2x3x8x8xf32, #tpu.memory_space<vmem>>, vector<1x1x3x8x8xf32>,
    } else {
    }
    return
  }
  func.func @transform_0(%arg0: i32, %arg1: i32, %arg2: i32, %arg3: memref<2xf32, #tpu.memory_space<smem>>) -> (i32, i32, i32, i32, i32) {
    %c1_i32 = arith.constant 1 : i32
    %0 = arith.muli %arg2, %c1_i32 : i32
    %1 = arith.addi %0, %arg1 : i32
    %c0_i32 = arith.constant 0 : i32
    %c0_i32_0 = arith.constant 0 : i32
    %c0_i32_1 = arith.constant 0 : i32
    %c0_i32_2 = arith.constant 0 : i32
    return %arg0, %c0_i32, %c0_i32_0, %1, %c0_i32_1 : i32, i32, i32, i32, i32
  }
  func.func @transform_1(%arg0: i32, %arg1: i32, %arg2: i32, %arg3: memref<2xf32, #tpu.memory_space<smem>>) -> (i32, i32, i32, i32, i32) {
    %c1_i32 = arith.constant 1 : i32
    %0 = arith.muli %arg2, %c1_i32 : i32
    %1 = arith.addi %0, %arg1 : i32
    %c0_i32 = arith.constant 0 : i32
    %c0_i32_0 = arith.constant 0 : i32
    %c0_i32_1 = arith.constant 0 : i32
    %c0_i32_2 = arith.constant 0 : i32
    return %arg0, %c0_i32, %c0_i32_0, %1, %c0_i32_1 : i32, i32, i32, i32, i32
  }
  func.func @transform_2(%arg0: i32, %arg1: i32, %arg2: i32, %arg3: memref<2xf32, #tpu.memory_space<smem>>) -> (i32, i32, i32, i32) {
    %c0_i32 = arith.constant 0 : i32
    %c0_i32_0 = arith.constant 0 : i32
    %c0_i32_1 = arith.constant 0 : i32
    return %arg0, %c0_i32, %arg1, %c0_i32_0 : i32, i32, i32, i32
  }
  func.func @transform_3(%arg0: i32, %arg1: i32, %arg2: i32, %arg3: memref<2xf32, #tpu.memory_space<smem>>) -> (i32, i32, i32, i32, i32) {
    %c0_i32 = arith.constant 0 : i32
    %c0_i32_0 = arith.constant 0 : i32
    %c0_i32_1 = arith.constant 0 : i32
    %c0_i32_2 = arith.constant 0 : i32
    return %arg0, %c0_i32, %c0_i32_0, %arg1, %c0_i32_1 : i32, i32, i32, i32, i32
  }
}

module attributes {stable_mosaic.version = 11 : i64} {
  func.func @_fx_kernel(%arg0: i32, %arg1: i32, %arg2: i32, %arg3: memref<2xf32, #tpu.memory_space<smem>>, %arg4: memref<1x2x3x8x16xf32, #tpu.memory_space<vmem>>, %arg5: memref<1x2x1x8x16xf32, #tpu.memory_space<vmem>>, %arg6: memref<1x2x3x8x8xf32, #tpu.memory_space<vmem>>, %arg7: memref<1x2x3x8x16xf32, #tpu.memory_space<vmem>>) attributes {dimension_semantics = [#tpu.dimension_semantics<parallel>, #tpu.dimension_semantics<parallel>, #tpu.dimension_semantics<parallel>], iteration_bounds = array<i64: 2, 1, 2>, scalar_prefetch = 1 : i64, scratch_operands = 0 : i64, tpu.core_type = #tpu.core_type<tc>, window_params = [{transform_indices = @transform_0, window_bounds = array<i64: 1, 2, 3, 8, 16>}, {transform_indices = @transform_1, window_bounds = array<i64: 1, 2, 1, 8, 16>}, {transform_indices = @transform_2, window_bounds = array<i64: 1, 2, 3, 8, 8>}, {transform_indices = @transform_3, window_bounds = array<i64: 1, 2, 3, 8, 16>}]} {
    %0 = arith.index_cast %arg0 : i32 to index
    %1 = memref.load %arg3[%0] : memref<2xf32, #tpu.memory_space<smem>>
    %cst = arith.constant 1.000000e+00 : f32
    %2 = arith.addf %cst, %1 : f32
    %3 = arith.divf %2, %1 : f32
    %c0 = arith.constant 0 : index
    %c0_0 = arith.constant 0 : index
    %c0_1 = arith.constant 0 : index
    %c0_2 = arith.constant 0 : index
    %c0_3 = arith.constant 0 : index
    %4 = vector.load %arg5[%c0, %c0_0, %c0_1, %c0_2, %c0_3] : memref<1x2x1x8x16xf32, #tpu.memory_space<vmem>>, vector<1x1x1x8x16xf32>
    %5 = vector.shape_cast %4 : vector<1x1x1x8x16xf32> to vector<8x16xf32>
    %c0_4 = arith.constant 0 : index
    %c1 = arith.constant 1 : index
    %c0_5 = arith.constant 0 : index
    %c0_6 = arith.constant 0 : index
    %c0_7 = arith.constant 0 : index
    %6 = vector.load %arg5[%c0_4, %c1, %c0_5, %c0_6, %c0_7] : memref<1x2x1x8x16xf32, #tpu.memory_space<vmem>>, vector<1x1x1x8x16xf32>
    %7 = vector.shape_cast %6 : vector<1x1x1x8x16xf32> to vector<8x16xf32>
    %c0_8 = arith.constant 0 : index
    %c0_9 = arith.constant 0 : index
    %c0_10 = arith.constant 0 : index
    %c0_11 = arith.constant 0 : index
    %c0_12 = arith.constant 0 : index
    %8 = vector.load %arg6[%c0_8, %c0_9, %c0_10, %c0_11, %c0_12] : memref<1x2x3x8x8xf32, #tpu.memory_space<vmem>>, vector<1x1x3x8x8xf32>
    %9 = vector.shape_cast %8 : vector<1x1x3x8x8xf32> to vector<3x8x8xf32>
    %10 = tpu.concatenate %9, %9 in 2 : vector<3x8x8xf32>, vector<3x8x8xf32> -> vector<3x8x16xf32>
    %c0_13 = arith.constant 0 : index
    %c1_14 = arith.constant 1 : index
    %c0_15 = arith.constant 0 : index
    %c0_16 = arith.constant 0 : index
    %c0_17 = arith.constant 0 : index
    %11 = vector.load %arg6[%c0_13, %c1_14, %c0_15, %c0_16, %c0_17] : memref<1x2x3x8x8xf32, #tpu.memory_space<vmem>>, vector<1x1x3x8x8xf32>
    %12 = vector.shape_cast %11 : vector<1x1x3x8x8xf32> to vector<3x8x8xf32>
    %13 = tpu.concatenate %12, %12 in 2 : vector<3x8x8xf32>, vector<3x8x8xf32> -> vector<3x8x16xf32>
    %14 = vector.shape_cast %5 : vector<8x16xf32> to vector<1x8x16xf32>
    %15 = vector.broadcast %14 : vector<1x8x16xf32> to vector<3x8x16xf32>
    %16 = arith.mulf %15, %10 : vector<3x8x16xf32>
    %17 = vector.shape_cast %7 : vector<8x16xf32> to vector<1x8x16xf32>
    %18 = vector.broadcast %17 : vector<1x8x16xf32> to vector<3x8x16xf32>
    %19 = arith.mulf %18, %13 : vector<3x8x16xf32>
    %20 = arith.addf %16, %19 : vector<3x8x16xf32>
    %21 = vector.shape_cast %5 : vector<8x16xf32> to vector<1x8x16xf32>
    %22 = vector.broadcast %21 : vector<1x8x16xf32> to vector<3x8x16xf32>
    %23 = arith.mulf %22, %13 : vector<3x8x16xf32>
    %24 = vector.shape_cast %7 : vector<8x16xf32> to vector<1x8x16xf32>
    %25 = vector.broadcast %24 : vector<1x8x16xf32> to vector<3x8x16xf32>
    %26 = arith.mulf %25, %10 : vector<3x8x16xf32>
    %27 = arith.subf %23, %26 : vector<3x8x16xf32>
    %c0_18 = arith.constant 0 : index
    %c0_19 = arith.constant 0 : index
    %c0_20 = arith.constant 0 : index
    %c0_21 = arith.constant 0 : index
    %c0_22 = arith.constant 0 : index
    %28 = vector.load %arg4[%c0_18, %c0_19, %c0_20, %c0_21, %c0_22] : memref<1x2x3x8x16xf32, #tpu.memory_space<vmem>>, vector<1x1x3x8x16xf32>
    %29 = vector.shape_cast %28 : vector<1x1x3x8x16xf32> to vector<3x8x16xf32>
    %30 = arith.subf %29, %20 : vector<3x8x16xf32>
    %31 = vector.broadcast %3 : f32 to vector<3x8x16xf32>
    %32 = arith.mulf %30, %31 : vector<3x8x16xf32>
    %c0_23 = arith.constant 0 : index
    %c0_24 = arith.constant 0 : index
    %c0_25 = arith.constant 0 : index
    %c0_26 = arith.constant 0 : index
    %c0_27 = arith.constant 0 : index
    %33 = vector.load %arg7[%c0_23, %c0_24, %c0_25, %c0_26, %c0_27] : memref<1x2x3x8x16xf32, #tpu.memory_space<vmem>>, vector<1x1x3x8x16xf32>
    %34 = vector.shape_cast %33 : vector<1x1x3x8x16xf32> to vector<3x8x16xf32>
    %35 = vector.shape_cast %32 : vector<3x8x16xf32> to vector<1x1x3x8x16xf32>
    tpu.vector_store %arg7[%c0_23, %c0_24, %c0_25, %c0_26, %c0_27], %35 {strides = array<i32>} : memref<1x2x3x8x16xf32, #tpu.memory_space<vmem>>, vector<1x1x3x8x16xf32>,
    %c0_28 = arith.constant 0 : index
    %c1_29 = arith.constant 1 : index
    %c0_30 = arith.constant 0 : index
    %c0_31 = arith.constant 0 : index
    %c0_32 = arith.constant 0 : index
    %36 = vector.load %arg4[%c0_28, %c1_29, %c0_30, %c0_31, %c0_32] : memref<1x2x3x8x16xf32, #tpu.memory_space<vmem>>, vector<1x1x3x8x16xf32>
    %37 = vector.shape_cast %36 : vector<1x1x3x8x16xf32> to vector<3x8x16xf32>
    %38 = arith.subf %37, %27 : vector<3x8x16xf32>
    %39 = vector.broadcast %3 : f32 to vector<3x8x16xf32>
    %40 = arith.mulf %38, %39 : vector<3x8x16xf32>
    %c0_33 = arith.constant 0 : index
    %c1_34 = arith.constant 1 : index
    %c0_35 = arith.constant 0 : index
    %c0_36 = arith.constant 0 : index
    %c0_37 = arith.constant 0 : index
    %41 = vector.load %arg7[%c0_33, %c1_34, %c0_35, %c0_36, %c0_37] : memref<1x2x3x8x16xf32, #tpu.memory_space<vmem>>, vector<1x1x3x8x16xf32>
    %42 = vector.shape_cast %41 : vector<1x1x3x8x16xf32> to vector<3x8x16xf32>
    %43 = vector.shape_cast %40 : vector<3x8x16xf32> to vector<1x1x3x8x16xf32>
    tpu.vector_store %arg7[%c0_33, %c1_34, %c0_35, %c0_36, %c0_37], %43 {strides = array<i32>} : memref<1x2x3x8x16xf32, #tpu.memory_space<vmem>>, vector<1x1x3x8x16xf32>,
    return
  }
  func.func @transform_0(%arg0: i32, %arg1: i32, %arg2: i32, %arg3: memref<2xf32, #tpu.memory_space<smem>>) -> (i32, i32, i32, i32, i32) {
    %c1_i32 = arith.constant 1 : i32
    %0 = arith.muli %arg2, %c1_i32 : i32
    %1 = arith.addi %0, %arg1 : i32
    %c0_i32 = arith.constant 0 : i32
    %c0_i32_0 = arith.constant 0 : i32
    %c0_i32_1 = arith.constant 0 : i32
    %c0_i32_2 = arith.constant 0 : i32
    return %arg0, %c0_i32, %c0_i32_0, %1, %c0_i32_1 : i32, i32, i32, i32, i32
  }
  func.func @transform_1(%arg0: i32, %arg1: i32, %arg2: i32, %arg3: memref<2xf32, #tpu.memory_space<smem>>) -> (i32, i32, i32, i32, i32) {
    %c1_i32 = arith.constant 1 : i32
    %0 = arith.muli %arg2, %c1_i32 : i32
    %1 = arith.addi %0, %arg1 : i32
    %c0_i32 = arith.constant 0 : i32
    %c0_i32_0 = arith.constant 0 : i32
    %c0_i32_1 = arith.constant 0 : i32
    %c0_i32_2 = arith.constant 0 : i32
    return %arg0, %c0_i32, %c0_i32_0, %1, %c0_i32_1 : i32, i32, i32, i32, i32
  }
  func.func @transform_2(%arg0: i32, %arg1: i32, %arg2: i32, %arg3: memref<2xf32, #tpu.memory_space<smem>>) -> (i32, i32, i32, i32, i32) {
    %c0_i32 = arith.constant 0 : i32
    %c0_i32_0 = arith.constant 0 : i32
    %c0_i32_1 = arith.constant 0 : i32
    %c0_i32_2 = arith.constant 0 : i32
    return %arg0, %c0_i32, %c0_i32_0, %arg1, %c0_i32_1 : i32, i32, i32, i32, i32
  }
  func.func @transform_3(%arg0: i32, %arg1: i32, %arg2: i32, %arg3: memref<2xf32, #tpu.memory_space<smem>>) -> (i32, i32, i32, i32, i32) {
    %c1_i32 = arith.constant 1 : i32
    %0 = arith.muli %arg2, %c1_i32 : i32
    %1 = arith.addi %0, %arg1 : i32
    %c0_i32 = arith.constant 0 : i32
    %c0_i32_0 = arith.constant 0 : i32
    %c0_i32_1 = arith.constant 0 : i32
    %c0_i32_2 = arith.constant 0 : i32
    return %arg0, %c0_i32, %c0_i32_0, %1, %c0_i32_1 : i32, i32, i32, i32, i32
  }
}

</mosaic_0001>

<llo_original>
// kernel: defaultnet_forward.5
$region0: #{defaultnet_forward.5}
  #allocation0 [shape = 'u32[]', space=smem, size = 0x4, offset = 0x4, fixed_abs, tag = 'smem constant byte address 0x4 - core index']
  #allocation1 [shape = 'u32[144,128]{1,0:T(1,128)}', space=vmem, size = 0x12000, scoped, tag = 'internal scratch']
  %s0 = inlined_call_operand.vmem [shape: f32[8,4], index: 0, kind: input, shape index: {}]
  %s1 = inlined_call_operand.vmem [shape: f32[4,64], index: 1, kind: input, shape index: {}]
  %s2 = inlined_call_operand.vmem [shape: f32[1,64], index: 2, kind: input, shape index: {}]
  %s3 = inlined_call_operand.vmem [shape: f32[64,64], index: 3, kind: input, shape index: {}]
  %s4 = inlined_call_operand.vmem [shape: f32[1,64], index: 4, kind: input, shape index: {}]
  %s5 = inlined_call_operand.vmem [shape: f32[64,4], index: 5, kind: input, shape index: {}]
  %s6 = inlined_call_operand.vmem [shape: f32[1,4], index: 6, kind: input, shape index: {}]
  %s7 = inlined_call_operand.vmem [shape: f32[8,4], index: 7, kind: output, shape index: {}]
  %s8 = sld [smem:[#allocation0]]
  $region38: #{defaultnet_forward.5} parent=0
    _
  %s10 = ssub.s32 1, %s8
  %s11 = scalar_select 0, %s10, %s8
  // Predicated region
  $region2: #{defaultnet_forward.5} parent=0 // pred_check
    _
  $region3: #{defaultnet_forward.5} parent=0 // pred_check_branch
    %13 = sbr.rel (0) target = $region5
  $region4: #{defaultnet_forward.5} parent=0 // pred_region
    _
  $region5: #{defaultnet_forward.5} parent=0 // pred_fallthru
    _
  // Predicated region
  $region6: #{defaultnet_forward.5} parent=0 // pred_check
    _
  $region7: #{defaultnet_forward.5} parent=0 // pred_check_branch
    %15 = sbr.rel (0) target = $region9
  $region8: #{defaultnet_forward.5} parent=0 // pred_region
    _
  $region9: #{defaultnet_forward.5} parent=0 // pred_fallthru
    _
  // Predicated region
  $region10: #{defaultnet_forward.5} parent=0 // pred_check
    _
  $region11: #{defaultnet_forward.5} parent=0 // pred_check_branch
    %17 = sbr.rel (0) target = $region13
  $region12: #{defaultnet_forward.5} parent=0 // pred_region
    _
  $region13: #{defaultnet_forward.5} parent=0 // pred_fallthru
    _
  // Predicated region
  $region14: #{defaultnet_forward.5} parent=0 // pred_check
    _
  $region15: #{defaultnet_forward.5} parent=0 // pred_check_branch
    %19 = sbr.rel (0) target = $region17
  $region16: #{defaultnet_forward.5} parent=0 // pred_region
    _
  $region17: #{defaultnet_forward.5} parent=0 // pred_fallthru
    _
  // Predicated region
  $region18: #{defaultnet_forward.5} parent=0 // pred_check
    _
  $region19: #{defaultnet_forward.5} parent=0 // pred_check_branch
    %21 = sbr.rel (0) target = $region21
  $region20: #{defaultnet_forward.5} parent=0 // pred_region
    _
  $region21: #{defaultnet_forward.5} parent=0 // pred_fallthru
    _
  // Predicated region
  $region22: #{defaultnet_forward.5} parent=0 // pred_check
    _
  $region23: #{defaultnet_forward.5} parent=0 // pred_check_branch
    %23 = sbr.rel (0) target = $region25
  $region24: #{defaultnet_forward.5} parent=0 // pred_region
    _
  $region25: #{defaultnet_forward.5} parent=0 // pred_fallthru
    _
  // Predicated region
  $region26: #{defaultnet_forward.5} parent=0 // pred_check
    _
  $region27: #{defaultnet_forward.5} parent=0 // pred_check_branch
    %25 = sbr.rel (0) target = $region29
  $region28: #{defaultnet_forward.5} parent=0 // pred_region
    _
  $region29: #{defaultnet_forward.5} parent=0 // pred_fallthru
    _
  %v26 = vld [vmem:[%s0] sm:$0xff]
  %v27 = vld [vmem:[%s1] sm:$0xf]
  %v28 = vld [vmem:[%s2] sm:$0x1]
  %v30 = vlaneseq
  %v31 = vshrl.u32 %v30, 7
  %v32 = vsub.s32 0, %v31
  %v33 = vrot.slane %v28, %v32
  %vm35 = vcmask 31744
  %v37 = vsel %vm35, %v26, 0
  %vm39 = vcmask 1043456
  %v41 = vsel %vm39, %v27, 0
  %43 = vmatprep.subr.mxu0 0.0
  %44 = vmatpush1.msra.mxu0 %v41
  %45 = vmatprep.subr.mxu0 0.0
  %46 = vmatpush1.msra.mxu0 0.0
  %47 = vmatprep.subr.mxu0 0.0
  %48 = vmatpush1.msra.mxu0 0.0
  %49 = vmatprep.subr.mxu0 0.0
  %50 = vmatpush1.msra.mxu0 0.0
  %51 = vmatprep.subr.mxu0 0.0
  %52 = vmatpush1.msra.mxu0 0.0
  %53 = vmatprep.subr.mxu0 0.0
  %54 = vmatpush1.msra.mxu0 0.0
  %55 = vmatprep.subr.mxu0 0.0
  %56 = vmatpush1.msra.mxu0 0.0
  %57 = vmatprep.subr.mxu0 0.0
  %58 = vmatpush1.msra.mxu0 0.0
  %59 = vmatprep.subr.mxu0 0.0
  %60 = vmatpush1.msra.mxu0 0.0
  %61 = vmatprep.subr.mxu0 0.0
  %62 = vmatpush1.msra.mxu0 0.0
  %63 = vmatprep.subr.mxu0 0.0
  %64 = vmatpush1.msra.mxu0 0.0
  %65 = vmatprep.subr.mxu0 0.0
  %66 = vmatpush1.msra.mxu0 0.0
  %67 = vmatprep.subr.mxu0 0.0
  %68 = vmatpush1.msra.mxu0 0.0
  %69 = vmatprep.subr.mxu0 0.0
  %70 = vmatpush1.msra.mxu0 0.0
  %71 = vmatprep.subr.mxu0 0.0
  %72 = vmatpush1.msra.mxu0 0.0
  %73 = vmatprep.subr.mxu0 0.0
  %74 = vmatpush1.msra.mxu0 0.0
  %75 = vmatprep.subr.mxu0 0.0
  %76 = vmatpush1.msra.mxu0 0.0
  %77 = vmatprep.subr.mxu0 0.0
  %78 = vmatpush1.msra.mxu0 0.0
  %79 = vmatprep.subr.mxu0 0.0
  %80 = vmatpush1.msra.mxu0 0.0
  %81 = vmatprep.subr.mxu0 0.0
  %82 = vmatpush1.msra.mxu0 0.0
  %83 = vmatprep.subr.mxu0 0.0
  %84 = vmatpush1.msra.mxu0 0.0
  %85 = vmatprep.subr.mxu0 0.0
  %86 = vmatpush1.msra.mxu0 0.0
  %87 = vmatprep.subr.mxu0 0.0
  %88 = vmatpush1.msra.mxu0 0.0
  %89 = vmatprep.subr.mxu0 0.0
  %90 = vmatpush1.msra.mxu0 0.0
  %91 = vmatprep.subr.mxu0 0.0
  %92 = vmatpush1.msra.mxu0 0.0
  %93 = vmatprep.subr.mxu0 0.0
  %94 = vmatpush1.msra.mxu0 0.0
  %95 = vmatprep.subr.mxu0 0.0
  %96 = vmatpush1.msra.mxu0 0.0
  %97 = vmatprep.subr.mxu0 0.0
  %98 = vmatpush1.msra.mxu0 0.0
  %99 = vmatprep.subr.mxu0 0.0
  %100 = vmatpush1.msra.mxu0 0.0
  %101 = vmatprep.subr.mxu0 0.0
  %102 = vmatpush1.msra.mxu0 0.0
  %103 = vmatprep.subr.mxu0 0.0
  %104 = vmatpush1.msra.mxu0 0.0
  %105 = vmatprep.subr.mxu0 0.0
  %106 = vmatpush1.msra.mxu0 0.0
  %107 = vmatprep.mubr.f32.mxu0 0.0
  %108 = vmatmul.mubr.f32.gmra.mrb[0].mxu0 %v37
  %v109 = vpop.f32.mrb[0].mxu0
  %v110 = vadd.f32 %v33, %v109
  %v111 = vpop.f32.mrb[0].mxu0
  %112 = vdwg.mxu0
  %v113 = vmax.f32 %v110, 0.0
  %v114 = vld [vmem:[%s3] sm:$0xff]
  %v115 = vld [vmem:[%s3 + $0x8] sm:$0xff]
  %v116 = vld [vmem:[%s3 + $0x10] sm:$0xff]
  %v117 = vld [vmem:[%s3 + $0x18] sm:$0xff]
  %v118 = vld [vmem:[%s3 + $0x20] sm:$0xff]
  %v119 = vld [vmem:[%s3 + $0x28] sm:$0xff]
  %v120 = vld [vmem:[%s3 + $0x30] sm:$0xff]
  %v121 = vld [vmem:[%s3 + $0x38] sm:$0xff]
  %v122 = vld [vmem:[%s4] sm:$0x1]
  %v124 = vlaneseq
  %v125 = vshrl.u32 %v124, 7
  %v126 = vsub.s32 0, %v125
  %v127 = vrot.slane %v122, %v126
  %vm129 = vcmask 523264
  %v131 = vsel %vm129, %v113, 0
  %133 = vmatprep.subr.mxu0 0.0
  %134 = vmatpush1.msra.mxu0 %v114
  %135 = vmatprep.subr.mxu0 0.0
  %136 = vmatpush1.msra.mxu0 %v115
  %137 = vmatprep.subr.mxu0 0.0
  %138 = vmatpush1.msra.mxu0 %v116
  %139 = vmatprep.subr.mxu0 0.0
  %140 = vmatpush1.msra.mxu0 %v117
  %141 = vmatprep.subr.mxu0 0.0
  %142 = vmatpush1.msra.mxu0 %v118
  %143 = vmatprep.subr.mxu0 0.0
  %144 = vmatpush1.msra.mxu0 %v119
  %145 = vmatprep.subr.mxu0 0.0
  %146 = vmatpush1.msra.mxu0 %v120
  %147 = vmatprep.subr.mxu0 0.0
  %148 = vmatpush1.msra.mxu0 %v121
  %149 = vmatprep.subr.mxu0 0.0
  %150 = vmatpush1.msra.mxu0 0.0
  %151 = vmatprep.subr.mxu0 0.0
  %152 = vmatpush1.msra.mxu0 0.0
  %153 = vmatprep.subr.mxu0 0.0
  %154 = vmatpush1.msra.mxu0 0.0
  %155 = vmatprep.subr.mxu0 0.0
  %156 = vmatpush1.msra.mxu0 0.0
  %157 = vmatprep.subr.mxu0 0.0
  %158 = vmatpush1.msra.mxu0 0.0
  %159 = vmatprep.subr.mxu0 0.0
  %160 = vmatpush1.msra.mxu0 0.0
  %161 = vmatprep.subr.mxu0 0.0
  %162 = vmatpush1.msra.mxu0 0.0
  %163 = vmatprep.subr.mxu0 0.0
  %164 = vmatpush1.msra.mxu0 0.0
  %165 = vmatprep.subr.mxu0 0.0
  %166 = vmatpush1.msra.mxu0 0.0
  %167 = vmatprep.subr.mxu0 0.0
  %168 = vmatpush1.msra.mxu0 0.0
  %169 = vmatprep.subr.mxu0 0.0
  %170 = vmatpush1.msra.mxu0 0.0
  %171 = vmatprep.subr.mxu0 0.0
  %172 = vmatpush1.msra.mxu0 0.0
  %173 = vmatprep.subr.mxu0 0.0
  %174 = vmatpush1.msra.mxu0 0.0
  %175 = vmatprep.subr.mxu0 0.0
  %176 = vmatpush1.msra.mxu0 0.0
  %177 = vmatprep.subr.mxu0 0.0
  %178 = vmatpush1.msra.mxu0 0.0
  %179 = vmatprep.subr.mxu0 0.0
  %180 = vmatpush1.msra.mxu0 0.0
  %181 = vmatprep.subr.mxu0 0.0
  %182 = vmatpush1.msra.mxu0 0.0
  %183 = vmatprep.subr.mxu0 0.0
  %184 = vmatpush1.msra.mxu0 0.0
  %185 = vmatprep.subr.mxu0 0.0
  %186 = vmatpush1.msra.mxu0 0.0
  %187 = vmatprep.subr.mxu0 0.0
  %188 = vmatpush1.msra.mxu0 0.0
  %189 = vmatprep.subr.mxu0 0.0
  %190 = vmatpush1.msra.mxu0 0.0
  %191 = vmatprep.subr.mxu0 0.0
  %192 = vmatpush1.msra.mxu0 0.0
  %193 = vmatprep.subr.mxu0 0.0
  %194 = vmatpush1.msra.mxu0 0.0
  %195 = vmatprep.subr.mxu0 0.0
  %196 = vmatpush1.msra.mxu0 0.0
  %197 = vmatprep.mubr.f32.mxu0 0.0
  %198 = vmatmul.mubr.f32.gmra.mrb[0].mxu0 %v131
  %v199 = vpop.f32.mrb[0].mxu0
  %v200 = vadd.f32 %v127, %v199
  %v201 = vpop.f32.mrb[0].mxu0
  %202 = vdwg.mxu0
  %v203 = vmax.f32 %v200, 0.0
  %v204 = vld [vmem:[%s5] sm:$0xff]
  %v205 = vld [vmem:[%s5 + $0x8] sm:$0xff]
  %v206 = vld [vmem:[%s5 + $0x10] sm:$0xff]
  %v207 = vld [vmem:[%s5 + $0x18] sm:$0xff]
  %v208 = vld [vmem:[%s5 + $0x20] sm:$0xff]
  %v209 = vld [vmem:[%s5 + $0x28] sm:$0xff]
  %v210 = vld [vmem:[%s5 + $0x30] sm:$0xff]
  %v211 = vld [vmem:[%s5 + $0x38] sm:$0xff]
  %v212 = vld [vmem:[%s6] sm:$0x1]
  %v214 = vlaneseq
  %v215 = vshrl.u32 %v214, 7
  %v216 = vsub.s32 0, %v215
  %v217 = vrot.slane %v212, %v216
  %v220 = vsel %vm129, %v203, 0
  %222 = vmatprep.subr.mxu0 0.0
  %223 = vmatpush1.msra.mxu0 %v204
  %224 = vmatprep.subr.mxu0 0.0
  %225 = vmatpush1.msra.mxu0 %v205
  %226 = vmatprep.subr.mxu0 0.0
  %227 = vmatpush1.msra.mxu0 %v206
  %228 = vmatprep.subr.mxu0 0.0
  %229 = vmatpush1.msra.mxu0 %v207
  %230 = vmatprep.subr.mxu0 0.0
  %231 = vmatpush1.msra.mxu0 %v208
  %232 = vmatprep.subr.mxu0 0.0
  %233 = vmatpush1.msra.mxu0 %v209
  %234 = vmatprep.subr.mxu0 0.0
  %235 = vmatpush1.msra.mxu0 %v210
  %236 = vmatprep.subr.mxu0 0.0
  %237 = vmatpush1.msra.mxu0 %v211
  %238 = vmatprep.subr.mxu0 0.0
  %239 = vmatpush1.msra.mxu0 0.0
  %240 = vmatprep.subr.mxu0 0.0
  %241 = vmatpush1.msra.mxu0 0.0
  %242 = vmatprep.subr.mxu0 0.0
  %243 = vmatpush1.msra.mxu0 0.0
  %244 = vmatprep.subr.mxu0 0.0
  %245 = vmatpush1.msra.mxu0 0.0
  %246 = vmatprep.subr.mxu0 0.0
  %247 = vmatpush1.msra.mxu0 0.0
  %248 = vmatprep.subr.mxu0 0.0
  %249 = vmatpush1.msra.mxu0 0.0
  %250 = vmatprep.subr.mxu0 0.0
  %251 = vmatpush1.msra.mxu0 0.0
  %252 = vmatprep.subr.mxu0 0.0
  %253 = vmatpush1.msra.mxu0 0.0
  %254 = vmatprep.subr.mxu0 0.0
  %255 = vmatpush1.msra.mxu0 0.0
  %256 = vmatprep.subr.mxu0 0.0
  %257 = vmatpush1.msra.mxu0 0.0
  %258 = vmatprep.subr.mxu0 0.0
  %259 = vmatpush1.msra.mxu0 0.0
  %260 = vmatprep.subr.mxu0 0.0
  %261 = vmatpush1.msra.mxu0 0.0
  %262 = vmatprep.subr.mxu0 0.0
  %263 = vmatpush1.msra.mxu0 0.0
  %264 = vmatprep.subr.mxu0 0.0
  %265 = vmatpush1.msra.mxu0 0.0
  %266 = vmatprep.subr.mxu0 0.0
  %267 = vmatpush1.msra.mxu0 0.0
  %268 = vmatprep.subr.mxu0 0.0
  %269 = vmatpush1.msra.mxu0 0.0
  %270 = vmatprep.subr.mxu0 0.0
  %271 = vmatpush1.msra.mxu0 0.0
  %272 = vmatprep.subr.mxu0 0.0
  %273 = vmatpush1.msra.mxu0 0.0
  %274 = vmatprep.subr.mxu0 0.0
  %275 = vmatpush1.msra.mxu0 0.0
  %276 = vmatprep.subr.mxu0 0.0
  %277 = vmatpush1.msra.mxu0 0.0
  %278 = vmatprep.subr.mxu0 0.0
  %279 = vmatpush1.msra.mxu0 0.0
  %280 = vmatprep.subr.mxu0 0.0
  %281 = vmatpush1.msra.mxu0 0.0
  %282 = vmatprep.subr.mxu0 0.0
  %283 = vmatpush1.msra.mxu0 0.0
  %284 = vmatprep.subr.mxu0 0.0
  %285 = vmatpush1.msra.mxu0 0.0
  %286 = vmatprep.mubr.f32.mxu0 0.0
  %287 = vmatmul.mubr.f32.gmra.mrb[0].mxu0 %v220
  %v288 = vpop.f32.mrb[0].mxu0
  %v289 = vadd.f32 %v217, %v288
  %v290 = vpop.f32.mrb[0].mxu0
  %291 = vdwg.mxu0
  %v292 = vmax.f32 %v289, 0.0
  %v293 = vand.u32 2147483647, %v289
  %v294 = vsub.f32 0.0, %v293
  %v295 = vmul.f32 %v294, 1.442695
  %v296 = vpow.pop %v295
  %v297 = vadd.f32 %v296, 1.0
  %v298 = vlog2.pop %v297
  %v299 = vmul.f32 %v298, 0.6931472
  %v300 = vmul.f32 -0.5, %v296
  %v301 = vadd.f32 %v300, 1.0
  %v302 = vmul.f32 %v301, %v296
  %v303 = vand.u32 2147483647, %v296
  %vm304 = vcmp.lt.f32.partialorder %v303, 0.0004427343
  %v305 = vsel %vm304, %v302, %v299
  %v306 = vadd.f32 %v292, %v305
  %v307 = vadd.f32 %v306, 1e-07
  %308 = vst.msk [vmem:[%s7] sm:$0xff] %vm35, %v307
  // Predicated region
  $region30: #{defaultnet_forward.5} parent=0 // pred_check
    _
  $region31: #{defaultnet_forward.5} parent=0 // pred_check_branch
    %310 = sbr.rel (0) target = $region33
  $region32: #{defaultnet_forward.5} parent=0 // pred_region
    _
  $region33: #{defaultnet_forward.5} parent=0 // pred_fallthru
    _
  // Predicated region
  $region34: #{defaultnet_forward.5} parent=0 // pred_check
    _
  $region35: #{defaultnet_forward.5} parent=0 // pred_check_branch
    %312 = sbr.rel (0) target = $region37
  $region36: #{defaultnet_forward.5} parent=0 // pred_region
    _
  $region37: #{defaultnet_forward.5} parent=0 // pred_fallthru
    _

// kernel: defaultnet_forward.7
$region0: #{defaultnet_forward.7}
  #allocation0 [shape = 'u32[]', space=smem, size = 0x4, offset = 0x4, fixed_abs, tag = 'smem constant byte address 0x4 - core index']
  #allocation1 [shape = 'u32[144,128]{1,0:T(1,128)}', space=vmem, size = 0x12000, scoped, tag = 'internal scratch']
  #allocation2 [shape = 's32[1]{0}', space=sflag, size = 0x4, scoped, tag = 'scoped memory for defaultnet_forward.7']
  #allocation3 [shape = 'u8[512]{0}', space=smem, size = 0x200, scoped, tag = 'prefetched SMEM operand 0']
  %s0 = inlined_call_operand.vmem [shape: f32[2], index: 0, kind: input, shape index: {}]
  %s1 = inlined_call_operand.vmem [shape: f32[2,2,3,16,16], index: 1, kind: input, shape index: {}]
  %s2 = inlined_call_operand.vmem [shape: f32[2,2,1,16,16], index: 2, kind: input, shape index: {}]
  %s3 = inlined_call_operand.vmem [shape: f32[2,2,3,8,8], index: 3, kind: input, shape index: {}]
  %s4 = inlined_call_operand.vmem [shape: f32[2,2,3,16,16], index: 4, kind: output, shape index: {}]
  %s5 = sld [smem:[#allocation0]]
  $region155: #{defaultnet_forward.7} parent=0
    _
  %s7 = ssub.s32 1, %s5
  %s8 = scalar_select 0, %s7, %s5
  %s9 = sshll.u32 %s0, 4
  %s10 = int_to_ptr.vmem [resolvable:$true] %s9
  %12 = dma.vmem_to_smem %s10, 16, [#allocation3], [#allocation2]
  %13 = dma.done [#allocation2], 16
  %14 = sfence
  $region1: #{defaultnet_forward.7} parent=0
    #allocation4 [shape = 'u8[49152]{0}', space=vmem, size = 0xc000, scoped, tag = 'input window, operand 1']
    #allocation5 [shape = 'u8[16384]{0}', space=vmem, size = 0x4000, scoped, tag = 'input window, operand 2']
    #allocation6 [shape = 'u8[49152]{0}', space=vmem, size = 0xc000, scoped, tag = 'output window, operand 0']
    loop: start=0, step=1, limit=6
    $region2: #{defaultnet_forward.7} parent=1 // loop_pre_header
      _
    $region3: #{defaultnet_forward.7} parent=1 // loop_header
      %s16 = sphi 0, %s20
      %p17 = scmp.ge.s32.totalorder %s16, 6
      %s23 = sphi 0, %s42
      %s24 = sphi 0, %s38
      %s25 = sphi 0, %s34
      %s26 = sphi 0, %s23
      %s27 = sphi 0, %s24
      %s28 = sphi 0, %s25
      %s29 = sphi 0, %s26
      %s30 = sphi 0, %s27
      %s31 = sphi 0, %s28
      %s49 = sphi 0, %s51
      %s52 = sphi 0, %s49
      %s53 = sphi 0, %s52
      %s69 = sphi 0, %s53
      %s79 = sphi 0, %s81
      %s82 = sphi 0, %s79
      %s83 = sphi 0, %s82
      %s99 = sphi 0, %s83
      %s107 = sphi 0, %s109
      %s110 = sphi 0, %s107
      %s111 = sphi 0, %s110
      %s127 = sphi 0, %s111
      %s137 = sphi 0, %s139
      %s140 = sphi 0, %s137
      %s141 = sphi 0, %s140
      %s157 = sphi 0, %s141
    $region4: #{defaultnet_forward.7} parent=1 // loop_header_branch
      %19 = sbr.rel (%p17) target = $region8
    $region5: #{defaultnet_forward.7} parent=1 // loop_body
      %s21 = ssub.s32 %s16, 1
      %s22 = ssub.s32 %s16, 2
      %s32 = sadd.s32 1, %s25
      %p33 = scmp.ge.s32.totalorder %s32, 2
      %s34 = scalar_select %p33, 0, %s32
      %s35 = sadd.s32 1, %s24
      %s36 = scalar_select %p33, %s35, %s24
      %p37 = scmp.ge.s32.totalorder %s36, 1
      %s38 = scalar_select %p37, 0, %s36
      %s39 = sadd.s32 1, %s23
      %s40 = scalar_select %p37, %s39, %s23
      %p41 = scmp.ge.s32.totalorder %s40, 2
      %s42 = scalar_select %p41, 0, %s40
      %s43 = sadd.s32 %s25, %s24
      %s44 = sadd.s32 %s34, %s38
      %s45 = ssub.s32 %s23, %s42
      %s46 = ssub.s32 %s43, %s44
      %s47 = sor.u32 %s45, %s46
      %p48 = scmp.eq.s32.totalorder %s47, 0
      %s50 = sadd.s32 %s49, 1
      %s51 = scalar_select %p48, %s49, %s50
      %p54 = pneg %p48
      %p55 = scmp.eq.s32.totalorder %s16, 3
      %p56 = por %p54, %p55
      %p57 = scmp.ne.s32.totalorder %s49, %s52
      %p58 = scmp.eq.s32.totalorder %s16, 0
      %p59 = por %p57, %p58
      %p60 = scmp.ne.s32.totalorder %s49, %s52
      %p61 = scmp.eq.s32.totalorder %s21, 3
      %p62 = por %p60, %p61
      %p63 = scmp.ne.s32.totalorder %s52, %s53
      %p64 = scmp.eq.s32.totalorder %s21, 0
      %p65 = por %p63, %p64
      %p66 = scmp.ne.s32.totalorder %s52, %s53
      %p67 = scmp.eq.s32.totalorder %s22, 3
      %p68 = por %p66, %p67
      %p70 = scmp.ne.s32.totalorder %s53, %s69
      %p71 = scmp.eq.s32.totalorder %s22, 0
      %p72 = por %p70, %p71
      %s73 = sadd.s32 %s25, %s24
      %s74 = sadd.s32 %s34, %s38
      %s75 = ssub.s32 %s23, %s42
      %s76 = ssub.s32 %s73, %s74
      %s77 = sor.u32 %s75, %s76
      %p78 = scmp.eq.s32.totalorder %s77, 0
      %s80 = sadd.s32 %s79, 1
      %s81 = scalar_select %p78, %s79, %s80
      %p84 = pneg %p78
      %p85 = scmp.eq.s32.totalorder %s16, 3
      %p86 = por %p84, %p85
      %p87 = scmp.ne.s32.totalorder %s79, %s82
      %p88 = scmp.eq.s32.totalorder %s16, 0
      %p89 = por %p87, %p88
      %p90 = scmp.ne.s32.totalorder %s79, %s82
      %p91 = scmp.eq.s32.totalorder %s21, 3
      %p92 = por %p90, %p91
      %p93 = scmp.ne.s32.totalorder %s82, %s83
      %p94 = scmp.eq.s32.totalorder %s21, 0
      %p95 = por %p93, %p94
      %p96 = scmp.ne.s32.totalorder %s82, %s83
      %p97 = scmp.eq.s32.totalorder %s22, 3
      %p98 = por %p96, %p97
      %p100 = scmp.ne.s32.totalorder %s83, %s99
      %p101 = scmp.eq.s32.totalorder %s22, 0
      %p102 = por %p100, %p101
      %s103 = ssub.s32 %s23, %s42
      %s104 = ssub.s32 %s24, %s38
      %s105 = sor.u32 %s103, %s104
      %p106 = scmp.eq.s32.totalorder %s105, 0
      %s108 = sadd.s32 %s107, 1
      %s109 = scalar_select %p106, %s107, %s108
      %p112 = pneg %p106
      %p113 = scmp.eq.s32.totalorder %s16, 3
      %p114 = por %p112, %p113
      %p115 = scmp.ne.s32.totalorder %s107, %s110
      %p116 = scmp.eq.s32.totalorder %s16, 0
      %p117 = por %p115, %p116
      %p118 = scmp.ne.s32.totalorder %s107, %s110
      %p119 = scmp.eq.s32.totalorder %s21, 3
      %p120 = por %p118, %p119
      %p121 = scmp.ne.s32.totalorder %s110, %s111
      %p122 = scmp.eq.s32.totalorder %s21, 0
      %p123 = por %p121, %p122
      %p124 = scmp.ne.s32.totalorder %s110, %s111
      %p125 = scmp.eq.s32.totalorder %s22, 3
      %p126 = por %p124, %p125
      %p128 = scmp.ne.s32.totalorder %s111, %s127
      %p129 = scmp.eq.s32.totalorder %s22, 0
      %p130 = por %p128, %p129
      %s131 = sadd.s32 %s25, %s24
      %s132 = sadd.s32 %s34, %s38
      %s133 = ssub.s32 %s23, %s42
      %s134 = ssub.s32 %s131, %s132
      %s135 = sor.u32 %s133, %s134
      %p136 = scmp.eq.s32.totalorder %s135, 0
      %s138 = sadd.s32 %s137, 1
      %s139 = scalar_select %p136, %s137, %s138
      %p142 = pneg %p136
      %p143 = scmp.eq.s32.totalorder %s16, 3
      %p144 = por %p142, %p143
      %p145 = scmp.ne.s32.totalorder %s137, %s140
      %p146 = scmp.eq.s32.totalorder %s16, 0
      %p147 = por %p145, %p146
      %p148 = scmp.ne.s32.totalorder %s137, %s140
      %p149 = scmp.eq.s32.totalorder %s21, 3
      %p150 = por %p148, %p149
      %p151 = scmp.ne.s32.totalorder %s140, %s141
      %p152 = scmp.eq.s32.totalorder %s21, 0
      %p153 = por %p151, %p152
      %p154 = scmp.ne.s32.totalorder %s140, %s141
      %p155 = scmp.eq.s32.totalorder %s22, 3
      %p156 = por %p154, %p155
      %p158 = scmp.ne.s32.totalorder %s141, %s157
      %p159 = scmp.eq.s32.totalorder %s22, 0
      %p160 = por %p158, %p159
      %p161 = scmp.le.s32.totalorder 1, %s16
      %p162 = scmp.lt.s32.totalorder %s16, 5
      %p163 = pnand %p161, %p162
      %p164 = pneg %p163
      // Predicated region
      $region9: #{defaultnet_forward.7} parent=5 // pred_check
        _
      $region10: #{defaultnet_forward.7} parent=5 // pred_check_branch
        %166 = sbr.rel (%p163) target = $region12
      $region11: #{defaultnet_forward.7} parent=5 // pred_region
        %s167 = ssub.s32 %s16, 1
      $region12: #{defaultnet_forward.7} parent=5 // pred_fallthru
        _
      %p168 = scmp.lt.s32.totalorder %s16, 4
      // Predicated region
      $region13: #{defaultnet_forward.7} parent=5 // pred_check
        %p169 = pneg %p168
      $region14: #{defaultnet_forward.7} parent=5 // pred_check_branch
        %171 = sbr.rel (%p169) target = $region16
      $region15: #{defaultnet_forward.7} parent=5 // pred_region
        // Predicated region
        $region17: #{defaultnet_forward.7} parent=15 // pred_check
          %p172 = pneg %p59
        $region18: #{defaultnet_forward.7} parent=15 // pred_check_branch
          %174 = sbr.rel (%p172) target = $region20
        $region19: #{defaultnet_forward.7} parent=15 // pred_region
          %s175 = sand.u32 %s49, 1
          %s176 = sand.u32 %s49, 1
          %s177 = smul.addr %s176, 48
          %s178 = scalar_lea.vmem [#allocation4], %s177
          %s179 = sadd.s32 %s25, %s24
          %s180 = smul.addr %s23, 12
          %s181 = sadd.s32 %s179, %s180
          %s182 = smul.addr %s181, 8
          %s183 = scalar_lea.vmem %s1, %s182
          // Predicated region
          $region21: #{defaultnet_forward.7} parent=19 // pred_check
            _
          $region22: #{defaultnet_forward.7} parent=19 // pred_check_branch
            %185 = sbr.rel (0) target = $region24
          $region23: #{defaultnet_forward.7} parent=19 // pred_region
            // Predicated region
            $region25: #{defaultnet_forward.7} parent=23 // pred_check
              _
            $region26: #{defaultnet_forward.7} parent=23 // pred_check_branch
              %187 = sbr.rel (0) target = $region28
            $region27: #{defaultnet_forward.7} parent=23 // pred_region
              // Predicated region
              $region40: #{defaultnet_forward.7} parent=27 // pred_check
                _
              $region41: #{defaultnet_forward.7} parent=27 // pred_check_branch
                %212 = sbr.rel (0) target = $region43
              $region42: #{defaultnet_forward.7} parent=27 // pred_region
                loop: start=0, step=1, limit=1
                $region44: #{defaultnet_forward.7} parent=42 // loop_pre_header
                  _
                $region45: #{defaultnet_forward.7} parent=42 // loop_header
                  %s214 = sphi 0, %s218
                  %p215 = scmp.ge.s32.totalorder %s214, 1
                  %s219 = sphi %s183, %s183
                  %s220 = sphi %s178, %s178
                $region46: #{defaultnet_forward.7} parent=42 // loop_header_branch
                  %217 = sbr.rel (%p215) target = $region50
                $region47: #{defaultnet_forward.7} parent=42 // loop_body
                  %v221 = vld [vmem:[%s219] sm:$0xff]
                  %222 = vst [vmem:[%s220] sm:$0xff] %v221
                  %v223 = vld [vmem:[%s219 + $0x10] sm:$0xff]
                  %224 = vst [vmem:[%s220 + $0x8] sm:$0xff] %v223
                  %v225 = vld [vmem:[%s219 + $0x20] sm:$0xff]
                  %226 = vst [vmem:[%s220 + $0x10] sm:$0xff] %v225
                  %v227 = vld [vmem:[%s219 + $0x30] sm:$0xff]
                  %228 = vst [vmem:[%s220 + $0x18] sm:$0xff] %v227
                  %v229 = vld [vmem:[%s219 + $0x40] sm:$0xff]
                  %230 = vst [vmem:[%s220 + $0x20] sm:$0xff] %v229
                  %v231 = vld [vmem:[%s219 + $0x50] sm:$0xff]
                  %232 = vst [vmem:[%s220 + $0x28] sm:$0xff] %v231
                $region48: #{defaultnet_forward.7} parent=42 // loop_footer
                  %s218 = sadd.s32 1, %s214
                $region49: #{defaultnet_forward.7} parent=42 // loop_footer_branch
                  %213 = sbr.rel target = $region45
                $region50: #{defaultnet_forward.7} parent=42 // loop_exit
                  _
              $region43: #{defaultnet_forward.7} parent=27 // pred_fallthru
                _
              // Predicated region
              $region51: #{defaultnet_forward.7} parent=27 // pred_check
                _
              $region52: #{defaultnet_forward.7} parent=27 // pred_check_branch
                %234 = sbr.rel target = $region54
              $region53: #{defaultnet_forward.7} parent=27 // pred_region
                _
              $region54: #{defaultnet_forward.7} parent=27 // pred_fallthru
                _
            $region28: #{defaultnet_forward.7} parent=23 // pred_fallthru
              _
            // Predicated region
            $region29: #{defaultnet_forward.7} parent=23 // pred_check
              _
            $region30: #{defaultnet_forward.7} parent=23 // pred_check_branch
              %189 = sbr.rel target = $region32
            $region31: #{defaultnet_forward.7} parent=23 // pred_region
              loop: start=0, step=1, limit=1
              $region33: #{defaultnet_forward.7} parent=31 // loop_pre_header
                _
              $region34: #{defaultnet_forward.7} parent=31 // loop_header
                %s192 = sphi 0, %s196
                %p193 = scmp.ge.s32.totalorder %s192, 1
                %s197 = sphi %s183, %s183
                %s198 = sphi %s178, %s178
              $region35: #{defaultnet_forward.7} parent=31 // loop_header_branch
                %195 = sbr.rel (%p193) target = $region39
              $region36: #{defaultnet_forward.7} parent=31 // loop_body
                %v199 = vld [vmem:[%s197] sm:$0xff]
                %200 = vst [vmem:[%s198] sm:$0xff] %v199
                %v201 = vld [vmem:[%s197 + $0x10] sm:$0xff]
                %202 = vst [vmem:[%s198 + $0x8] sm:$0xff] %v201
                %v203 = vld [vmem:[%s197 + $0x20] sm:$0xff]
                %204 = vst [vmem:[%s198 + $0x10] sm:$0xff] %v203
                %v205 = vld [vmem:[%s197 + $0x30] sm:$0xff]
                %206 = vst [vmem:[%s198 + $0x18] sm:$0xff] %v205
                %v207 = vld [vmem:[%s197 + $0x40] sm:$0xff]
                %208 = vst [vmem:[%s198 + $0x20] sm:$0xff] %v207
                %v209 = vld [vmem:[%s197 + $0x50] sm:$0xff]
                %210 = vst [vmem:[%s198 + $0x28] sm:$0xff] %v209
              $region37: #{defaultnet_forward.7} parent=31 // loop_footer
                %s196 = sadd.s32 1, %s192
              $region38: #{defaultnet_forward.7} parent=31 // loop_footer_branch
                %191 = sbr.rel target = $region34
              $region39: #{defaultnet_forward.7} parent=31 // loop_exit
                _
            $region32: #{defaultnet_forward.7} parent=23 // pred_fallthru
              _
          $region24: #{defaultnet_forward.7} parent=19 // pred_fallthru
            _
          %235 = vnop
        $region20: #{defaultnet_forward.7} parent=15 // pred_fallthru
          _
        // Predicated region
        $region55: #{defaultnet_forward.7} parent=15 // pred_check
          %p236 = pneg %p89
        $region56: #{defaultnet_forward.7} parent=15 // pred_check_branch
          %238 = sbr.rel (%p236) target = $region58
        $region57: #{defaultnet_forward.7} parent=15 // pred_region
          %s239 = sand.u32 %s79, 1
          %s240 = sand.u32 %s79, 1
          %s241 = smul.addr %s240, 16
          %s242 = scalar_lea.vmem [#allocation5], %s241
          %s243 = sadd.s32 %s25, %s24
          %s244 = smul.addr %s23, 4
          %s245 = sadd.s32 %s243, %s244
          %s246 = smul.addr %s245, 8
          %s247 = scalar_lea.vmem %s2, %s246
          // Predicated region
          $region59: #{defaultnet_forward.7} parent=57 // pred_check
            _
          $region60: #{defaultnet_forward.7} parent=57 // pred_check_branch
            %249 = sbr.rel (0) target = $region62
          $region61: #{defaultnet_forward.7} parent=57 // pred_region
            // Predicated region
            $region63: #{defaultnet_forward.7} parent=61 // pred_check
              _
            $region64: #{defaultnet_forward.7} parent=61 // pred_check_branch
              %251 = sbr.rel (0) target = $region66
            $region65: #{defaultnet_forward.7} parent=61 // pred_region
              // Predicated region
              $region78: #{defaultnet_forward.7} parent=65 // pred_check
                _
              $region79: #{defaultnet_forward.7} parent=65 // pred_check_branch
                %268 = sbr.rel (0) target = $region81
              $region80: #{defaultnet_forward.7} parent=65 // pred_region
                loop: start=0, step=1, limit=1
                $region82: #{defaultnet_forward.7} parent=80 // loop_pre_header
                  _
                $region83: #{defaultnet_forward.7} parent=80 // loop_header
                  %s270 = sphi 0, %s274
                  %p271 = scmp.ge.s32.totalorder %s270, 1
                  %s275 = sphi %s247, %s247
                  %s276 = sphi %s242, %s242
                $region84: #{defaultnet_forward.7} parent=80 // loop_header_branch
                  %273 = sbr.rel (%p271) target = $region88
                $region85: #{defaultnet_forward.7} parent=80 // loop_body
                  %v277 = vld [vmem:[%s275] sm:$0xff]
                  %278 = vst [vmem:[%s276] sm:$0xff] %v277
                  %v279 = vld [vmem:[%s275 + $0x10] sm:$0xff]
                  %280 = vst [vmem:[%s276 + $0x8] sm:$0xff] %v279
                $region86: #{defaultnet_forward.7} parent=80 // loop_footer
                  %s274 = sadd.s32 1, %s270
                $region87: #{defaultnet_forward.7} parent=80 // loop_footer_branch
                  %269 = sbr.rel target = $region83
                $region88: #{defaultnet_forward.7} parent=80 // loop_exit
                  _
              $region81: #{defaultnet_forward.7} parent=65 // pred_fallthru
                _
              // Predicated region
              $region89: #{defaultnet_forward.7} parent=65 // pred_check
                _
              $region90: #{defaultnet_forward.7} parent=65 // pred_check_branch
                %282 = sbr.rel target = $region92
              $region91: #{defaultnet_forward.7} parent=65 // pred_region
                _
              $region92: #{defaultnet_forward.7} parent=65 // pred_fallthru
                _
            $region66: #{defaultnet_forward.7} parent=61 // pred_fallthru
              _
            // Predicated region
            $region67: #{defaultnet_forward.7} parent=61 // pred_check
              _
            $region68: #{defaultnet_forward.7} parent=61 // pred_check_branch
              %253 = sbr.rel target = $region70
            $region69: #{defaultnet_forward.7} parent=61 // pred_region
              loop: start=0, step=1, limit=1
              $region71: #{defaultnet_forward.7} parent=69 // loop_pre_header
                _
              $region72: #{defaultnet_forward.7} parent=69 // loop_header
                %s256 = sphi 0, %s260
                %p257 = scmp.ge.s32.totalorder %s256, 1
                %s261 = sphi %s247, %s247
                %s262 = sphi %s242, %s242
              $region73: #{defaultnet_forward.7} parent=69 // loop_header_branch
                %259 = sbr.rel (%p257) target = $region77
              $region74: #{defaultnet_forward.7} parent=69 // loop_body
                %v263 = vld [vmem:[%s261] sm:$0xff]
                %264 = vst [vmem:[%s262] sm:$0xff] %v263
                %v265 = vld [vmem:[%s261 + $0x10] sm:$0xff]
                %266 = vst [vmem:[%s262 + $0x8] sm:$0xff] %v265
              $region75: #{defaultnet_forward.7} parent=69 // loop_footer
                %s260 = sadd.s32 1, %s256
              $region76: #{defaultnet_forward.7} parent=69 // loop_footer_branch
                %255 = sbr.rel target = $region72
              $region77: #{defaultnet_forward.7} parent=69 // loop_exit
                _
            $region70: #{defaultnet_forward.7} parent=61 // pred_fallthru
              _
          $region62: #{defaultnet_forward.7} parent=57 // pred_fallthru
            _
          %283 = vnop
        $region58: #{defaultnet_forward.7} parent=15 // pred_fallthru
          _
        // Predicated region
        $region93: #{defaultnet_forward.7} parent=15 // pred_check
          %p284 = pneg %p117
        $region94: #{defaultnet_forward.7} parent=15 // pred_check_branch
          %286 = sbr.rel (%p284) target = $region96
        $region95: #{defaultnet_forward.7} parent=15 // pred_region
          %p287 = scmp.lt.s32.totalorder %s23, 1
          %s288 = scalar_select %p287, %s23, 1
          %p289 = scmp.lt.s32.totalorder %s24, 0
          %s290 = scalar_select %p289, %s24, 0
          %s291 = smul.addr %s288, 6
          %s292 = sadd.s32 %s290, %s291
          %s293 = smul.addr %s292, 8
          %s294 = scalar_lea.vmem %s3, %s293
        $region96: #{defaultnet_forward.7} parent=15 // pred_fallthru
          _
      $region16: #{defaultnet_forward.7} parent=5 // pred_fallthru
        _
      %p295 = scmp.le.s32.totalorder 1, %s16
      %p296 = scmp.lt.s32.totalorder %s16, 5
      %p297 = pnand %p295, %p296
      %p298 = pneg %p297
      // Predicated region
      $region97: #{defaultnet_forward.7} parent=5 // pred_check
        _
      $region98: #{defaultnet_forward.7} parent=5 // pred_check_branch
        %300 = sbr.rel (%p297) target = $region100
      $region99: #{defaultnet_forward.7} parent=5 // pred_region
        %s301 = ssub.s32 %s16, 1
        %s302 = sand.u32 %s52, 1
        %s303 = sand.u32 %s52, 1
        %s304 = smul.addr %s303, 48
        %s305 = scalar_lea.vmem [#allocation4], %s304
        // Predicated region
        $region101: #{defaultnet_forward.7} parent=99 // pred_check
          %p306 = pneg %p65
        $region102: #{defaultnet_forward.7} parent=99 // pred_check_branch
          %308 = sbr.rel (%p306) target = $region104
        $region103: #{defaultnet_forward.7} parent=99 // pred_region
          _
        $region104: #{defaultnet_forward.7} parent=99 // pred_fallthru
          _
        %s309 = sand.u32 %s82, 1
        %s310 = sand.u32 %s82, 1
        %s311 = smul.addr %s310, 16
        %s312 = scalar_lea.vmem [#allocation5], %s311
        // Predicated region
        $region105: #{defaultnet_forward.7} parent=99 // pred_check
          %p313 = pneg %p95
        $region106: #{defaultnet_forward.7} parent=99 // pred_check_branch
          %315 = sbr.rel (%p313) target = $region108
        $region107: #{defaultnet_forward.7} parent=99 // pred_region
          _
        $region108: #{defaultnet_forward.7} parent=99 // pred_fallthru
          _
        %s316 = sand.u32 %s52, 1
        %s317 = sand.u32 %s52, 1
        %s318 = smul.addr %s317, 48
        %s319 = scalar_lea.vmem [#allocation4], %s318
        %p320 = pneg %p65
        %p321 = pneg %p62
        %s322 = sand.u32 %s82, 1
        %s323 = sand.u32 %s82, 1
        %s324 = smul.addr %s323, 16
        %s325 = scalar_lea.vmem [#allocation5], %s324
        %p326 = pneg %p95
        %p327 = pneg %p92
        %p328 = scmp.lt.s32.totalorder %s26, 1
        %s329 = scalar_select %p328, %s26, 1
        %p330 = scmp.lt.s32.totalorder %s27, 0
        %s331 = scalar_select %p330, %s27, 0
        %s332 = smul.addr %s329, 6
        %s333 = sadd.s32 %s331, %s332
        %s334 = smul.addr %s333, 8
        %s335 = scalar_lea.vmem %s3, %s334
        %p336 = pneg %p123
        %p337 = pneg %p120
        %p338 = pneg %p153
        %p339 = pneg %p150
        %s340 = sand.u32 %s140, 1
        %s341 = sand.u32 %s140, 1
        %s342 = smul.addr %s341, 48
        %s343 = scalar_lea.vmem [#allocation6], %s342
        %s344 = sadd.s32 %s28, %s27
        %s345 = sadd.s32 %s28, %s27
        %p346 = scmp.lt.s32.totalorder %s26, 1
        %s347 = scalar_select %p346, %s26, 1
        %p348 = scmp.lt.s32.totalorder %s27, 0
        %s349 = scalar_select %p348, %s27, 0
        %s350 = smul.addr %s347, 6
        %s351 = sadd.s32 %s349, %s350
        %s352 = smul.addr %s351, 8
        %s353 = scalar_lea.vmem %s3, %s352
        %s354 = sadd.s32 %s28, %s27
        %s355 = sld [smem:[#allocation3 + %s26]]
        %s356 = sadd.f32 %s355, 1.0
        %v357 = vstv %s355
        %v358 = vrcp.pop %v357
        %s359 = vtos %v358
        %s360 = smul.f32 %s356, %s359
        %v361 = vld [vmem:[%s312] sm:$0xff]
        %s362 = scalar_lea.vmem %s312, 8 [#allocation5]
        %v363 = vld [vmem:[%s362] sm:$0xff]
        %v364 = vld [vmem:[%s353] sm:$0xff]
        %v365 = vld [vmem:[%s353 + $0x8] sm:$0xff]
        %v366 = vld [vmem:[%s353 + $0x10] sm:$0xff]
        %370 = vrot.lane.b32.xlu0 %v364, 8
        %v371 = vpop.permute.xlu0 %370
        %372 = vrot.lane.b32.xlu0 %v365, 8
        %v373 = vpop.permute.xlu0 %372
        %374 = vrot.lane.b32.xlu0 %v366, 8
        %v375 = vpop.permute.xlu0 %374
        %vm379 = vcmask 64512
        %v380 = vsel %vm379, %v364, %v371
        %v381 = vsel %vm379, %v365, %v373
        %v382 = vsel %vm379, %v366, %v375
        %s383 = scalar_lea.vmem %s353, 24
        %v384 = vld [vmem:[%s383] sm:$0xff]
        %v385 = vld [vmem:[%s383 + $0x8] sm:$0xff]
        %v386 = vld [vmem:[%s383 + $0x10] sm:$0xff]
        %390 = vrot.lane.b32.xlu0 %v384, 8
        %v391 = vpop.permute.xlu0 %390
        %392 = vrot.lane.b32.xlu0 %v385, 8
        %v393 = vpop.permute.xlu0 %392
        %394 = vrot.lane.b32.xlu0 %v386, 8
        %v395 = vpop.permute.xlu0 %394
        %v399 = vsel %vm379, %v384, %v391
        %v400 = vsel %vm379, %v385, %v393
        %v401 = vsel %vm379, %v386, %v395
        %v402 = vmul.f32 %v361, %v380
        %v403 = vmul.f32 %v361, %v381
        %v404 = vmul.f32 %v361, %v382
        %v405 = vmul.f32 %v363, %v399
        %v406 = vmul.f32 %v363, %v400
        %v407 = vmul.f32 %v363, %v401
        %v408 = vadd.f32 %v402, %v405
        %v409 = vadd.f32 %v403, %v406
        %v410 = vadd.f32 %v404, %v407
        %v411 = vmul.f32 %v361, %v399
        %v412 = vmul.f32 %v361, %v400
        %v413 = vmul.f32 %v361, %v401
        %v414 = vmul.f32 %v363, %v380
        %v415 = vmul.f32 %v363, %v381
        %v416 = vmul.f32 %v363, %v382
        %v417 = vsub.f32 %v411, %v414
        %v418 = vsub.f32 %v412, %v415
        %v419 = vsub.f32 %v413, %v416
        %v420 = vld [vmem:[%s305] sm:$0xff]
        %v421 = vld [vmem:[%s305 + $0x8] sm:$0xff]
        %v422 = vld [vmem:[%s305 + $0x10] sm:$0xff]
        %v423 = vsub.f32 %v420, %v408
        %v424 = vsub.f32 %v421, %v409
        %v425 = vsub.f32 %v422, %v410
        %v426 = vstv %s360
        %v427 = vmul.f32 %v423, %v426
        %v428 = vmul.f32 %v424, %v426
        %v429 = vmul.f32 %v425, %v426
        %vm430 = vcmask 130048
        %431 = vst.msk [vmem:[%s343] sm:$0xff] %vm430, %v427
        %432 = vst.msk [vmem:[%s343 + $0x8] sm:$0xff] %vm430, %v428
        %433 = vst.msk [vmem:[%s343 + $0x10] sm:$0xff] %vm430, %v429
        %s434 = scalar_lea.vmem %s305, 24 [#allocation4]
        %v435 = vld [vmem:[%s434] sm:$0xff]
        %v436 = vld [vmem:[%s434 + $0x8] sm:$0xff]
        %v437 = vld [vmem:[%s434 + $0x10] sm:$0xff]
        %v438 = vsub.f32 %v435, %v417
        %v439 = vsub.f32 %v436, %v418
        %v440 = vsub.f32 %v437, %v419
        %v441 = vmul.f32 %v438, %v426
        %v442 = vmul.f32 %v439, %v426
        %v443 = vmul.f32 %v440, %v426
        %s444 = scalar_lea.vmem %s343, 24 [#allocation6]
        %445 = vst.msk [vmem:[%s444] sm:$0xff] %vm430, %v441
        %446 = vst.msk [vmem:[%s444 + $0x8] sm:$0xff] %vm430, %v442
        %447 = vst.msk [vmem:[%s444 + $0x10] sm:$0xff] %vm430, %v443
        %s448 = sand.u32 %s140, 1
        %s449 = sand.u32 %s140, 1
        %s450 = smul.addr %s449, 48
        %s451 = scalar_lea.vmem [#allocation6], %s450
        // Predicated region
        $region109: #{defaultnet_forward.7} parent=99 // pred_check
          %p452 = pneg %p150
        $region110: #{defaultnet_forward.7} parent=99 // pred_check_branch
          %454 = sbr.rel (%p452) target = $region112
        $region111: #{defaultnet_forward.7} parent=99 // pred_region
          %s455 = sadd.s32 %s28, %s27
          %s456 = smul.addr %s26, 12
          %s457 = sadd.s32 %s455, %s456
          %s458 = smul.addr %s457, 8
          %s459 = scalar_lea.vmem %s4, %s458
          // Predicated region
          $region113: #{defaultnet_forward.7} parent=111 // pred_check
            _
          $region114: #{defaultnet_forward.7} parent=111 // pred_check_branch
            %461 = sbr.rel (0) target = $region116
          $region115: #{defaultnet_forward.7} parent=111 // pred_region
            // Predicated region
            $region117: #{defaultnet_forward.7} parent=115 // pred_check
              _
            $region118: #{defaultnet_forward.7} parent=115 // pred_check_branch
              %463 = sbr.rel (0) target = $region120
            $region119: #{defaultnet_forward.7} parent=115 // pred_region
              // Predicated region
              $region132: #{defaultnet_forward.7} parent=119 // pred_check
                _
              $region133: #{defaultnet_forward.7} parent=119 // pred_check_branch
                %488 = sbr.rel (0) target = $region135
              $region134: #{defaultnet_forward.7} parent=119 // pred_region
                loop: start=0, step=1, limit=1
                $region136: #{defaultnet_forward.7} parent=134 // loop_pre_header
                  _
                $region137: #{defaultnet_forward.7} parent=134 // loop_header
                  %s490 = sphi 0, %s494
                  %p491 = scmp.ge.s32.totalorder %s490, 1
                  %s495 = sphi %s451, %s451
                  %s496 = sphi %s459, %s459
                $region138: #{defaultnet_forward.7} parent=134 // loop_header_branch
                  %493 = sbr.rel (%p491) target = $region142
                $region139: #{defaultnet_forward.7} parent=134 // loop_body
                  %v497 = vld [vmem:[%s495] sm:$0xff]
                  %498 = vst [vmem:[%s496] sm:$0xff] %v497
                  %v499 = vld [vmem:[%s495 + $0x8] sm:$0xff]
                  %500 = vst [vmem:[%s496 + $0x10] sm:$0xff] %v499
                  %v501 = vld [vmem:[%s495 + $0x10] sm:$0xff]
                  %502 = vst [vmem:[%s496 + $0x20] sm:$0xff] %v501
                  %v503 = vld [vmem:[%s495 + $0x18] sm:$0xff]
                  %504 = vst [vmem:[%s496 + $0x30] sm:$0xff] %v503
                  %v505 = vld [vmem:[%s495 + $0x20] sm:$0xff]
                  %506 = vst [vmem:[%s496 + $0x40] sm:$0xff] %v505
                  %v507 = vld [vmem:[%s495 + $0x28] sm:$0xff]
                  %508 = vst [vmem:[%s496 + $0x50] sm:$0xff] %v507
                $region140: #{defaultnet_forward.7} parent=134 // loop_footer
                  %s494 = sadd.s32 1, %s490
                $region141: #{defaultnet_forward.7} parent=134 // loop_footer_branch
                  %489 = sbr.rel target = $region137
                $region142: #{defaultnet_forward.7} parent=134 // loop_exit
                  _
              $region135: #{defaultnet_forward.7} parent=119 // pred_fallthru
                _
              // Predicated region
              $region143: #{defaultnet_forward.7} parent=119 // pred_check
                _
              $region144: #{defaultnet_forward.7} parent=119 // pred_check_branch
                %510 = sbr.rel target = $region146
              $region145: #{defaultnet_forward.7} parent=119 // pred_region
                _
              $region146: #{defaultnet_forward.7} parent=119 // pred_fallthru
                _
            $region120: #{defaultnet_forward.7} parent=115 // pred_fallthru
              _
            // Predicated region
            $region121: #{defaultnet_forward.7} parent=115 // pred_check
              _
            $region122: #{defaultnet_forward.7} parent=115 // pred_check_branch
              %465 = sbr.rel target = $region124
            $region123: #{defaultnet_forward.7} parent=115 // pred_region
              loop: start=0, step=1, limit=1
              $region125: #{defaultnet_forward.7} parent=123 // loop_pre_header
                _
              $region126: #{defaultnet_forward.7} parent=123 // loop_header
                %s468 = sphi 0, %s472
                %p469 = scmp.ge.s32.totalorder %s468, 1
                %s473 = sphi %s451, %s451
                %s474 = sphi %s459, %s459
              $region127: #{defaultnet_forward.7} parent=123 // loop_header_branch
                %471 = sbr.rel (%p469) target = $region131
              $region128: #{defaultnet_forward.7} parent=123 // loop_body
                %v475 = vld [vmem:[%s473] sm:$0xff]
                %476 = vst [vmem:[%s474] sm:$0xff] %v475
                %v477 = vld [vmem:[%s473 + $0x8] sm:$0xff]
                %478 = vst [vmem:[%s474 + $0x10] sm:$0xff] %v477
                %v479 = vld [vmem:[%s473 + $0x10] sm:$0xff]
                %480 = vst [vmem:[%s474 + $0x20] sm:$0xff] %v479
                %v481 = vld [vmem:[%s473 + $0x18] sm:$0xff]
                %482 = vst [vmem:[%s474 + $0x30] sm:$0xff] %v481
                %v483 = vld [vmem:[%s473 + $0x20] sm:$0xff]
                %484 = vst [vmem:[%s474 + $0x40] sm:$0xff] %v483
                %v485 = vld [vmem:[%s473 + $0x28] sm:$0xff]
                %486 = vst [vmem:[%s474 + $0x50] sm:$0xff] %v485
              $region129: #{defaultnet_forward.7} parent=123 // loop_footer
                %s472 = sadd.s32 1, %s468
              $region130: #{defaultnet_forward.7} parent=123 // loop_footer_branch
                %467 = sbr.rel target = $region126
              $region131: #{defaultnet_forward.7} parent=123 // loop_exit
                _
            $region124: #{defaultnet_forward.7} parent=115 // pred_fallthru
              _
          $region116: #{defaultnet_forward.7} parent=111 // pred_fallthru
            _
          %511 = vnop
        $region112: #{defaultnet_forward.7} parent=99 // pred_fallthru
          _
      $region100: #{defaultnet_forward.7} parent=5 // pred_fallthru
        _
      %p512 = scmp.le.s32.totalorder 2, %s16
      // Predicated region
      $region147: #{defaultnet_forward.7} parent=5 // pred_check
        %p513 = pneg %p512
      $region148: #{defaultnet_forward.7} parent=5 // pred_check_branch
        %515 = sbr.rel (%p513) target = $region150
      $region149: #{defaultnet_forward.7} parent=5 // pred_region
        %s516 = ssub.s32 %s16, 2
        // Predicated region
        $region151: #{defaultnet_forward.7} parent=149 // pred_check
          %p517 = pneg %p156
        $region152: #{defaultnet_forward.7} parent=149 // pred_check_branch
          %519 = sbr.rel (%p517) target = $region154
        $region153: #{defaultnet_forward.7} parent=149 // pred_region
          %s520 = sand.u32 %s141, 1
          %s521 = sand.u32 %s141, 1
          %s522 = smul.addr %s521, 48
          %s523 = scalar_lea.vmem [#allocation6], %s522
        $region154: #{defaultnet_forward.7} parent=149 // pred_fallthru
          _
      $region150: #{defaultnet_forward.7} parent=5 // pred_fallthru
        _
    $region6: #{defaultnet_forward.7} parent=1 // loop_footer
      %s20 = sadd.s32 1, %s16
    $region7: #{defaultnet_forward.7} parent=1 // loop_footer_branch
      %15 = sbr.rel target = $region3
    $region8: #{defaultnet_forward.7} parent=1 // loop_exit
      _

// kernel: defaultnet_forward.6
$region0: #{defaultnet_forward.6}
  #allocation0 [shape = 'u32[]', space=smem, size = 0x4, offset = 0x4, fixed_abs, tag = 'smem constant byte address 0x4 - core index']
  #allocation1 [shape = 'u32[144,128]{1,0:T(1,128)}', space=vmem, size = 0x12000, scoped, tag = 'internal scratch']
  #allocation2 [shape = 's32[1]{0}', space=sflag, size = 0x4, scoped, tag = 'scoped memory for defaultnet_forward.6']
  #allocation3 [shape = 'u8[512]{0}', space=smem, size = 0x200, scoped, tag = 'prefetched SMEM operand 0']
  %s0 = inlined_call_operand.vmem [shape: f32[2], index: 0, kind: input, shape index: {}]
  %s1 = inlined_call_operand.vmem [shape: f32[2,2,3,16,16], index: 1, kind: input, shape index: {}]
  %s2 = inlined_call_operand.vmem [shape: f32[2,2,1,16,16], index: 2, kind: input, shape index: {}]
  %s3 = inlined_call_operand.vmem [shape: f32[2,1,8,8], index: 3, kind: input, shape index: {}]
  %s4 = inlined_call_operand.vmem [shape: f32[2,2,3,8,8], index: 4, kind: output, shape index: {}]
  %s5 = sld [smem:[#allocation0]]
  $region129: #{defaultnet_forward.6} parent=0
    _
  %s7 = ssub.s32 1, %s5
  %s8 = scalar_select 0, %s7, %s5
  %s9 = sshll.u32 %s0, 4
  %s10 = int_to_ptr.vmem [resolvable:$true] %s9
  %12 = dma.vmem_to_smem %s10, 16, [#allocation3], [#allocation2]
  %13 = dma.done [#allocation2], 16
  %14 = sfence
  $region1: #{defaultnet_forward.6} parent=0
    #allocation4 [shape = 'u8[49152]{0}', space=vmem, size = 0xc000, scoped, tag = 'input window, operand 1']
    #allocation5 [shape = 'u8[16384]{0}', space=vmem, size = 0x4000, scoped, tag = 'input window, operand 2']
    loop: start=0, step=1, limit=6
    $region2: #{defaultnet_forward.6} parent=1 // loop_pre_header
      _
    $region3: #{defaultnet_forward.6} parent=1 // loop_header
      %s16 = sphi 0, %s20
      %p17 = scmp.ge.s32.totalorder %s16, 6
      %s23 = sphi 0, %s42
      %s24 = sphi 0, %s38
      %s25 = sphi 0, %s34
      %s26 = sphi 0, %s23
      %s27 = sphi 0, %s24
      %s28 = sphi 0, %s25
      %s29 = sphi 0, %s26
      %s30 = sphi 0, %s27
      %s31 = sphi 0, %s28
      %s49 = sphi 0, %s51
      %s52 = sphi 0, %s49
      %s53 = sphi 0, %s52
      %s69 = sphi 0, %s53
      %s79 = sphi 0, %s81
      %s82 = sphi 0, %s79
      %s83 = sphi 0, %s82
      %s99 = sphi 0, %s83
      %s107 = sphi 0, %s109
      %s110 = sphi 0, %s107
      %s111 = sphi 0, %s110
      %s127 = sphi 0, %s111
      %s135 = sphi 0, %s137
      %s138 = sphi 0, %s135
      %s139 = sphi 0, %s138
      %s155 = sphi 0, %s139
    $region4: #{defaultnet_forward.6} parent=1 // loop_header_branch
      %19 = sbr.rel (%p17) target = $region8
    $region5: #{defaultnet_forward.6} parent=1 // loop_body
      %s21 = ssub.s32 %s16, 1
      %s22 = ssub.s32 %s16, 2
      %s32 = sadd.s32 1, %s25
      %p33 = scmp.ge.s32.totalorder %s32, 2
      %s34 = scalar_select %p33, 0, %s32
      %s35 = sadd.s32 1, %s24
      %s36 = scalar_select %p33, %s35, %s24
      %p37 = scmp.ge.s32.totalorder %s36, 1
      %s38 = scalar_select %p37, 0, %s36
      %s39 = sadd.s32 1, %s23
      %s40 = scalar_select %p37, %s39, %s23
      %p41 = scmp.ge.s32.totalorder %s40, 2
      %s42 = scalar_select %p41, 0, %s40
      %s43 = sadd.s32 %s25, %s24
      %s44 = sadd.s32 %s34, %s38
      %s45 = ssub.s32 %s23, %s42
      %s46 = ssub.s32 %s43, %s44
      %s47 = sor.u32 %s45, %s46
      %p48 = scmp.eq.s32.totalorder %s47, 0
      %s50 = sadd.s32 %s49, 1
      %s51 = scalar_select %p48, %s49, %s50
      %p54 = pneg %p48
      %p55 = scmp.eq.s32.totalorder %s16, 3
      %p56 = por %p54, %p55
      %p57 = scmp.ne.s32.totalorder %s49, %s52
      %p58 = scmp.eq.s32.totalorder %s16, 0
      %p59 = por %p57, %p58
      %p60 = scmp.ne.s32.totalorder %s49, %s52
      %p61 = scmp.eq.s32.totalorder %s21, 3
      %p62 = por %p60, %p61
      %p63 = scmp.ne.s32.totalorder %s52, %s53
      %p64 = scmp.eq.s32.totalorder %s21, 0
      %p65 = por %p63, %p64
      %p66 = scmp.ne.s32.totalorder %s52, %s53
      %p67 = scmp.eq.s32.totalorder %s22, 3
      %p68 = por %p66, %p67
      %p70 = scmp.ne.s32.totalorder %s53, %s69
      %p71 = scmp.eq.s32.totalorder %s22, 0
      %p72 = por %p70, %p71
      %s73 = sadd.s32 %s25, %s24
      %s74 = sadd.s32 %s34, %s38
      %s75 = ssub.s32 %s23, %s42
      %s76 = ssub.s32 %s73, %s74
      %s77 = sor.u32 %s75, %s76
      %p78 = scmp.eq.s32.totalorder %s77, 0
      %s80 = sadd.s32 %s79, 1
      %s81 = scalar_select %p78, %s79, %s80
      %p84 = pneg %p78
      %p85 = scmp.eq.s32.totalorder %s16, 3
      %p86 = por %p84, %p85
      %p87 = scmp.ne.s32.totalorder %s79, %s82
      %p88 = scmp.eq.s32.totalorder %s16, 0
      %p89 = por %p87, %p88
      %p90 = scmp.ne.s32.totalorder %s79, %s82
      %p91 = scmp.eq.s32.totalorder %s21, 3
      %p92 = por %p90, %p91
      %p93 = scmp.ne.s32.totalorder %s82, %s83
      %p94 = scmp.eq.s32.totalorder %s21, 0
      %p95 = por %p93, %p94
      %p96 = scmp.ne.s32.totalorder %s82, %s83
      %p97 = scmp.eq.s32.totalorder %s22, 3
      %p98 = por %p96, %p97
      %p100 = scmp.ne.s32.totalorder %s83, %s99
      %p101 = scmp.eq.s32.totalorder %s22, 0
      %p102 = por %p100, %p101
      %s103 = ssub.s32 %s23, %s42
      %s104 = ssub.s32 %s24, %s38
      %s105 = sor.u32 %s103, %s104
      %p106 = scmp.eq.s32.totalorder %s105, 0
      %s108 = sadd.s32 %s107, 1
      %s109 = scalar_select %p106, %s107, %s108
      %p112 = pneg %p106
      %p113 = scmp.eq.s32.totalorder %s16, 3
      %p114 = por %p112, %p113
      %p115 = scmp.ne.s32.totalorder %s107, %s110
      %p116 = scmp.eq.s32.totalorder %s16, 0
      %p117 = por %p115, %p116
      %p118 = scmp.ne.s32.totalorder %s107, %s110
      %p119 = scmp.eq.s32.totalorder %s21, 3
      %p120 = por %p118, %p119
      %p121 = scmp.ne.s32.totalorder %s110, %s111
      %p122 = scmp.eq.s32.totalorder %s21, 0
      %p123 = por %p121, %p122
      %p124 = scmp.ne.s32.totalorder %s110, %s111
      %p125 = scmp.eq.s32.totalorder %s22, 3
      %p126 = por %p124, %p125
      %p128 = scmp.ne.s32.totalorder %s111, %s127
      %p129 = scmp.eq.s32.totalorder %s22, 0
      %p130 = por %p128, %p129
      %s131 = ssub.s32 %s23, %s42
      %s132 = ssub.s32 %s24, %s38
      %s133 = sor.u32 %s131, %s132
      %p134 = scmp.eq.s32.totalorder %s133, 0
      %s136 = sadd.s32 %s135, 1
      %s137 = scalar_select %p134, %s135, %s136
      %p140 = pneg %p134
      %p141 = scmp.eq.s32.totalorder %s16, 3
      %p142 = por %p140, %p141
      %p143 = scmp.ne.s32.totalorder %s135, %s138
      %p144 = scmp.eq.s32.totalorder %s16, 0
      %p145 = por %p143, %p144
      %p146 = scmp.ne.s32.totalorder %s135, %s138
      %p147 = scmp.eq.s32.totalorder %s21, 3
      %p148 = por %p146, %p147
      %p149 = scmp.ne.s32.totalorder %s138, %s139
      %p150 = scmp.eq.s32.totalorder %s21, 0
      %p151 = por %p149, %p150
      %p152 = scmp.ne.s32.totalorder %s138, %s139
      %p153 = scmp.eq.s32.totalorder %s22, 3
      %p154 = por %p152, %p153
      %p156 = scmp.ne.s32.totalorder %s139, %s155
      %p157 = scmp.eq.s32.totalorder %s22, 0
      %p158 = por %p156, %p157
      %p159 = scmp.le.s32.totalorder 1, %s16
      %p160 = scmp.lt.s32.totalorder %s16, 5
      %p161 = pnand %p159, %p160
      %p162 = pneg %p161
      // Predicated region
      $region9: #{defaultnet_forward.6} parent=5 // pred_check
        _
      $region10: #{defaultnet_forward.6} parent=5 // pred_check_branch
        %164 = sbr.rel (%p161) target = $region12
      $region11: #{defaultnet_forward.6} parent=5 // pred_region
        %s165 = ssub.s32 %s16, 1
      $region12: #{defaultnet_forward.6} parent=5 // pred_fallthru
        _
      %p166 = scmp.lt.s32.totalorder %s16, 4
      // Predicated region
      $region13: #{defaultnet_forward.6} parent=5 // pred_check
        %p167 = pneg %p166
      $region14: #{defaultnet_forward.6} parent=5 // pred_check_branch
        %169 = sbr.rel (%p167) target = $region16
      $region15: #{defaultnet_forward.6} parent=5 // pred_region
        // Predicated region
        $region17: #{defaultnet_forward.6} parent=15 // pred_check
          %p170 = pneg %p59
        $region18: #{defaultnet_forward.6} parent=15 // pred_check_branch
          %172 = sbr.rel (%p170) target = $region20
        $region19: #{defaultnet_forward.6} parent=15 // pred_region
          %s173 = sand.u32 %s49, 1
          %s174 = sand.u32 %s49, 1
          %s175 = smul.addr %s174, 48
          %s176 = scalar_lea.vmem [#allocation4], %s175
          %s177 = sadd.s32 %s25, %s24
          %s178 = smul.addr %s23, 12
          %s179 = sadd.s32 %s177, %s178
          %s180 = smul.addr %s179, 8
          %s181 = scalar_lea.vmem %s1, %s180
          // Predicated region
          $region21: #{defaultnet_forward.6} parent=19 // pred_check
            _
          $region22: #{defaultnet_forward.6} parent=19 // pred_check_branch
            %183 = sbr.rel (0) target = $region24
          $region23: #{defaultnet_forward.6} parent=19 // pred_region
            // Predicated region
            $region25: #{defaultnet_forward.6} parent=23 // pred_check
              _
            $region26: #{defaultnet_forward.6} parent=23 // pred_check_branch
              %185 = sbr.rel (0) target = $region28
            $region27: #{defaultnet_forward.6} parent=23 // pred_region
              // Predicated region
              $region40: #{defaultnet_forward.6} parent=27 // pred_check
                _
              $region41: #{defaultnet_forward.6} parent=27 // pred_check_branch
                %210 = sbr.rel (0) target = $region43
              $region42: #{defaultnet_forward.6} parent=27 // pred_region
                loop: start=0, step=1, limit=1
                $region44: #{defaultnet_forward.6} parent=42 // loop_pre_header
                  _
                $region45: #{defaultnet_forward.6} parent=42 // loop_header
                  %s212 = sphi 0, %s216
                  %p213 = scmp.ge.s32.totalorder %s212, 1
                  %s217 = sphi %s181, %s181
                  %s218 = sphi %s176, %s176
                $region46: #{defaultnet_forward.6} parent=42 // loop_header_branch
                  %215 = sbr.rel (%p213) target = $region50
                $region47: #{defaultnet_forward.6} parent=42 // loop_body
                  %v219 = vld [vmem:[%s217] sm:$0xff]
                  %220 = vst [vmem:[%s218] sm:$0xff] %v219
                  %v221 = vld [vmem:[%s217 + $0x10] sm:$0xff]
                  %222 = vst [vmem:[%s218 + $0x8] sm:$0xff] %v221
                  %v223 = vld [vmem:[%s217 + $0x20] sm:$0xff]
                  %224 = vst [vmem:[%s218 + $0x10] sm:$0xff] %v223
                  %v225 = vld [vmem:[%s217 + $0x30] sm:$0xff]
                  %226 = vst [vmem:[%s218 + $0x18] sm:$0xff] %v225
                  %v227 = vld [vmem:[%s217 + $0x40] sm:$0xff]
                  %228 = vst [vmem:[%s218 + $0x20] sm:$0xff] %v227
                  %v229 = vld [vmem:[%s217 + $0x50] sm:$0xff]
                  %230 = vst [vmem:[%s218 + $0x28] sm:$0xff] %v229
                $region48: #{defaultnet_forward.6} parent=42 // loop_footer
                  %s216 = sadd.s32 1, %s212
                $region49: #{defaultnet_forward.6} parent=42 // loop_footer_branch
                  %211 = sbr.rel target = $region45
                $region50: #{defaultnet_forward.6} parent=42 // loop_exit
                  _
              $region43: #{defaultnet_forward.6} parent=27 // pred_fallthru
                _
              // Predicated region
              $region51: #{defaultnet_forward.6} parent=27 // pred_check
                _
              $region52: #{defaultnet_forward.6} parent=27 // pred_check_branch
                %232 = sbr.rel target = $region54
              $region53: #{defaultnet_forward.6} parent=27 // pred_region
                _
              $region54: #{defaultnet_forward.6} parent=27 // pred_fallthru
                _
            $region28: #{defaultnet_forward.6} parent=23 // pred_fallthru
              _
            // Predicated region
            $region29: #{defaultnet_forward.6} parent=23 // pred_check
              _
            $region30: #{defaultnet_forward.6} parent=23 // pred_check_branch
              %187 = sbr.rel target = $region32
            $region31: #{defaultnet_forward.6} parent=23 // pred_region
              loop: start=0, step=1, limit=1
              $region33: #{defaultnet_forward.6} parent=31 // loop_pre_header
                _
              $region34: #{defaultnet_forward.6} parent=31 // loop_header
                %s190 = sphi 0, %s194
                %p191 = scmp.ge.s32.totalorder %s190, 1
                %s195 = sphi %s181, %s181
                %s196 = sphi %s176, %s176
              $region35: #{defaultnet_forward.6} parent=31 // loop_header_branch
                %193 = sbr.rel (%p191) target = $region39
              $region36: #{defaultnet_forward.6} parent=31 // loop_body
                %v197 = vld [vmem:[%s195] sm:$0xff]
                %198 = vst [vmem:[%s196] sm:$0xff] %v197
                %v199 = vld [vmem:[%s195 + $0x10] sm:$0xff]
                %200 = vst [vmem:[%s196 + $0x8] sm:$0xff] %v199
                %v201 = vld [vmem:[%s195 + $0x20] sm:$0xff]
                %202 = vst [vmem:[%s196 + $0x10] sm:$0xff] %v201
                %v203 = vld [vmem:[%s195 + $0x30] sm:$0xff]
                %204 = vst [vmem:[%s196 + $0x18] sm:$0xff] %v203
                %v205 = vld [vmem:[%s195 + $0x40] sm:$0xff]
                %206 = vst [vmem:[%s196 + $0x20] sm:$0xff] %v205
                %v207 = vld [vmem:[%s195 + $0x50] sm:$0xff]
                %208 = vst [vmem:[%s196 + $0x28] sm:$0xff] %v207
              $region37: #{defaultnet_forward.6} parent=31 // loop_footer
                %s194 = sadd.s32 1, %s190
              $region38: #{defaultnet_forward.6} parent=31 // loop_footer_branch
                %189 = sbr.rel target = $region34
              $region39: #{defaultnet_forward.6} parent=31 // loop_exit
                _
            $region32: #{defaultnet_forward.6} parent=23 // pred_fallthru
              _
          $region24: #{defaultnet_forward.6} parent=19 // pred_fallthru
            _
          %233 = vnop
        $region20: #{defaultnet_forward.6} parent=15 // pred_fallthru
          _
        // Predicated region
        $region55: #{defaultnet_forward.6} parent=15 // pred_check
          %p234 = pneg %p89
        $region56: #{defaultnet_forward.6} parent=15 // pred_check_branch
          %236 = sbr.rel (%p234) target = $region58
        $region57: #{defaultnet_forward.6} parent=15 // pred_region
          %s237 = sand.u32 %s79, 1
          %s238 = sand.u32 %s79, 1
          %s239 = smul.addr %s238, 16
          %s240 = scalar_lea.vmem [#allocation5], %s239
          %s241 = sadd.s32 %s25, %s24
          %s242 = smul.addr %s23, 4
          %s243 = sadd.s32 %s241, %s242
          %s244 = smul.addr %s243, 8
          %s245 = scalar_lea.vmem %s2, %s244
          // Predicated region
          $region59: #{defaultnet_forward.6} parent=57 // pred_check
            _
          $region60: #{defaultnet_forward.6} parent=57 // pred_check_branch
            %247 = sbr.rel (0) target = $region62
          $region61: #{defaultnet_forward.6} parent=57 // pred_region
            // Predicated region
            $region63: #{defaultnet_forward.6} parent=61 // pred_check
              _
            $region64: #{defaultnet_forward.6} parent=61 // pred_check_branch
              %249 = sbr.rel (0) target = $region66
            $region65: #{defaultnet_forward.6} parent=61 // pred_region
              // Predicated region
              $region78: #{defaultnet_forward.6} parent=65 // pred_check
                _
              $region79: #{defaultnet_forward.6} parent=65 // pred_check_branch
                %266 = sbr.rel (0) target = $region81
              $region80: #{defaultnet_forward.6} parent=65 // pred_region
                loop: start=0, step=1, limit=1
                $region82: #{defaultnet_forward.6} parent=80 // loop_pre_header
                  _
                $region83: #{defaultnet_forward.6} parent=80 // loop_header
                  %s268 = sphi 0, %s272
                  %p269 = scmp.ge.s32.totalorder %s268, 1
                  %s273 = sphi %s245, %s245
                  %s274 = sphi %s240, %s240
                $region84: #{defaultnet_forward.6} parent=80 // loop_header_branch
                  %271 = sbr.rel (%p269) target = $region88
                $region85: #{defaultnet_forward.6} parent=80 // loop_body
                  %v275 = vld [vmem:[%s273] sm:$0xff]
                  %276 = vst [vmem:[%s274] sm:$0xff] %v275
                  %v277 = vld [vmem:[%s273 + $0x10] sm:$0xff]
                  %278 = vst [vmem:[%s274 + $0x8] sm:$0xff] %v277
                $region86: #{defaultnet_forward.6} parent=80 // loop_footer
                  %s272 = sadd.s32 1, %s268
                $region87: #{defaultnet_forward.6} parent=80 // loop_footer_branch
                  %267 = sbr.rel target = $region83
                $region88: #{defaultnet_forward.6} parent=80 // loop_exit
                  _
              $region81: #{defaultnet_forward.6} parent=65 // pred_fallthru
                _
              // Predicated region
              $region89: #{defaultnet_forward.6} parent=65 // pred_check
                _
              $region90: #{defaultnet_forward.6} parent=65 // pred_check_branch
                %280 = sbr.rel target = $region92
              $region91: #{defaultnet_forward.6} parent=65 // pred_region
                _
              $region92: #{defaultnet_forward.6} parent=65 // pred_fallthru
                _
            $region66: #{defaultnet_forward.6} parent=61 // pred_fallthru
              _
            // Predicated region
            $region67: #{defaultnet_forward.6} parent=61 // pred_check
              _
            $region68: #{defaultnet_forward.6} parent=61 // pred_check_branch
              %251 = sbr.rel target = $region70
            $region69: #{defaultnet_forward.6} parent=61 // pred_region
              loop: start=0, step=1, limit=1
              $region71: #{defaultnet_forward.6} parent=69 // loop_pre_header
                _
              $region72: #{defaultnet_forward.6} parent=69 // loop_header
                %s254 = sphi 0, %s258
                %p255 = scmp.ge.s32.totalorder %s254, 1
                %s259 = sphi %s245, %s245
                %s260 = sphi %s240, %s240
              $region73: #{defaultnet_forward.6} parent=69 // loop_header_branch
                %257 = sbr.rel (%p255) target = $region77
              $region74: #{defaultnet_forward.6} parent=69 // loop_body
                %v261 = vld [vmem:[%s259] sm:$0xff]
                %262 = vst [vmem:[%s260] sm:$0xff] %v261
                %v263 = vld [vmem:[%s259 + $0x10] sm:$0xff]
                %264 = vst [vmem:[%s260 + $0x8] sm:$0xff] %v263
              $region75: #{defaultnet_forward.6} parent=69 // loop_footer
                %s258 = sadd.s32 1, %s254
              $region76: #{defaultnet_forward.6} parent=69 // loop_footer_branch
                %253 = sbr.rel target = $region72
              $region77: #{defaultnet_forward.6} parent=69 // loop_exit
                _
            $region70: #{defaultnet_forward.6} parent=61 // pred_fallthru
              _
          $region62: #{defaultnet_forward.6} parent=57 // pred_fallthru
            _
          %281 = vnop
        $region58: #{defaultnet_forward.6} parent=15 // pred_fallthru
          _
        // Predicated region
        $region93: #{defaultnet_forward.6} parent=15 // pred_check
          %p282 = pneg %p117
        $region94: #{defaultnet_forward.6} parent=15 // pred_check_branch
          %284 = sbr.rel (%p282) target = $region96
        $region95: #{defaultnet_forward.6} parent=15 // pred_region
          %p285 = scmp.lt.s32.totalorder %s23, 1
          %s286 = scalar_select %p285, %s23, 1
          %p287 = scmp.lt.s32.totalorder %s24, 0
          %s288 = scalar_select %p287, %s24, 0
          %s289 = sadd.s32 %s288, %s286
          %s290 = smul.addr %s289, 8
          %s291 = scalar_lea.vmem %s3, %s290
        $region96: #{defaultnet_forward.6} parent=15 // pred_fallthru
          _
      $region16: #{defaultnet_forward.6} parent=5 // pred_fallthru
        _
      %p292 = scmp.le.s32.totalorder 1, %s16
      %p293 = scmp.lt.s32.totalorder %s16, 5
      %p294 = pnand %p292, %p293
      %p295 = pneg %p294
      // Predicated region
      $region97: #{defaultnet_forward.6} parent=5 // pred_check
        _
      $region98: #{defaultnet_forward.6} parent=5 // pred_check_branch
        %297 = sbr.rel (%p294) target = $region100
      $region99: #{defaultnet_forward.6} parent=5 // pred_region
        %s298 = ssub.s32 %s16, 1
        %s299 = sand.u32 %s52, 1
        %s300 = sand.u32 %s52, 1
        %s301 = smul.addr %s300, 48
        %s302 = scalar_lea.vmem [#allocation4], %s301
        // Predicated region
        $region101: #{defaultnet_forward.6} parent=99 // pred_check
          %p303 = pneg %p65
        $region102: #{defaultnet_forward.6} parent=99 // pred_check_branch
          %305 = sbr.rel (%p303) target = $region104
        $region103: #{defaultnet_forward.6} parent=99 // pred_region
          _
        $region104: #{defaultnet_forward.6} parent=99 // pred_fallthru
          _
        %s306 = sand.u32 %s82, 1
        %s307 = sand.u32 %s82, 1
        %s308 = smul.addr %s307, 16
        %s309 = scalar_lea.vmem [#allocation5], %s308
        // Predicated region
        $region105: #{defaultnet_forward.6} parent=99 // pred_check
          %p310 = pneg %p95
        $region106: #{defaultnet_forward.6} parent=99 // pred_check_branch
          %312 = sbr.rel (%p310) target = $region108
        $region107: #{defaultnet_forward.6} parent=99 // pred_region
          _
        $region108: #{defaultnet_forward.6} parent=99 // pred_fallthru
          _
        %s313 = sand.u32 %s52, 1
        %s314 = sand.u32 %s52, 1
        %s315 = smul.addr %s314, 48
        %s316 = scalar_lea.vmem [#allocation4], %s315
        %p317 = pneg %p65
        %p318 = pneg %p62
        %s319 = sand.u32 %s82, 1
        %s320 = sand.u32 %s82, 1
        %s321 = smul.addr %s320, 16
        %s322 = scalar_lea.vmem [#allocation5], %s321
        %p323 = pneg %p95
        %p324 = pneg %p92
        %p325 = scmp.lt.s32.totalorder %s26, 1
        %s326 = scalar_select %p325, %s26, 1
        %p327 = scmp.lt.s32.totalorder %s27, 0
        %s328 = scalar_select %p327, %s27, 0
        %s329 = sadd.s32 %s328, %s326
        %s330 = smul.addr %s329, 8
        %s331 = scalar_lea.vmem %s3, %s330
        %p332 = pneg %p123
        %p333 = pneg %p120
        %p334 = pneg %p151
        %p335 = pneg %p148
        %p336 = scmp.lt.s32.totalorder %s26, 1
        %s337 = scalar_select %p336, %s26, 1
        %p338 = scmp.lt.s32.totalorder %s27, 0
        %s339 = scalar_select %p338, %s27, 0
        %s340 = smul.addr %s337, 6
        %s341 = sadd.s32 %s339, %s340
        %s342 = smul.addr %s341, 8
        %s343 = scalar_lea.vmem %s4, %s342
        %s344 = sadd.s32 %s28, %s27
        %s345 = sadd.s32 %s28, %s27
        %p346 = scmp.lt.s32.totalorder %s26, 1
        %s347 = scalar_select %p346, %s26, 1
        %p348 = scmp.lt.s32.totalorder %s27, 0
        %s349 = scalar_select %p348, %s27, 0
        %s350 = sadd.s32 %s349, %s347
        %s351 = smul.addr %s350, 8
        %s352 = scalar_lea.vmem %s3, %s351
        %p353 = scmp.lt.s32.totalorder %s26, 1
        %s354 = scalar_select %p353, %s26, 1
        %p355 = scmp.lt.s32.totalorder %s27, 0
        %s356 = scalar_select %p355, %s27, 0
        %s357 = smul.addr %s354, 6
        %s358 = sadd.s32 %s356, %s357
        %s359 = smul.addr %s358, 8
        %s360 = scalar_lea.vmem %s4, %s359
        %p361 = scmp.eq.s32.totalorder %s28, 0
        // Predicated region
        $region109: #{defaultnet_forward.6} parent=99 // pred_check
          %p362 = pneg %p361
        $region110: #{defaultnet_forward.6} parent=99 // pred_check_branch
          %364 = sbr.rel (%p362) target = $region112
        $region111: #{defaultnet_forward.6} parent=99 // pred_region
          %vm365 = vcmask 64512
          %366 = vst.msk [vmem:[%s360] sm:$0xff] %vm365, 0.0
          %367 = vst.msk [vmem:[%s360 + $0x8] sm:$0xff] %vm365, 0.0
          %368 = vst.msk [vmem:[%s360 + $0x10] sm:$0xff] %vm365, 0.0
          %369 = vst.msk [vmem:[%s360 + $0x18] sm:$0xff] %vm365, 0.0
          %370 = vst.msk [vmem:[%s360 + $0x20] sm:$0xff] %vm365, 0.0
          %371 = vst.msk [vmem:[%s360 + $0x28] sm:$0xff] %vm365, 0.0
        $region112: #{defaultnet_forward.6} parent=99 // pred_fallthru
          _
        %v372 = vld [vmem:[%s302] sm:$0xff]
        %v373 = vld [vmem:[%s302 + $0x8] sm:$0xff]
        %v374 = vld [vmem:[%s302 + $0x10] sm:$0xff]
        %s375 = scalar_lea.vmem %s302, 24 [#allocation4]
        %v376 = vld [vmem:[%s375] sm:$0xff]
        %v377 = vld [vmem:[%s375 + $0x8] sm:$0xff]
        %v378 = vld [vmem:[%s375 + $0x10] sm:$0xff]
        %v379 = vld [vmem:[%s309] sm:$0xff]
        %s380 = scalar_lea.vmem %s309, 8 [#allocation5]
        %v381 = vld [vmem:[%s380] sm:$0xff]
        %v382 = vmul.f32 %v379, %v372
        %v383 = vmul.f32 %v379, %v373
        %v384 = vmul.f32 %v379, %v374
        %v385 = vmul.f32 %v381, %v376
        %v386 = vmul.f32 %v381, %v377
        %v387 = vmul.f32 %v381, %v378
        %v388 = vsub.f32 %v382, %v385
        %v389 = vsub.f32 %v383, %v386
        %v390 = vsub.f32 %v384, %v387
        %v391 = vmul.f32 %v379, %v376
        %v392 = vmul.f32 %v379, %v377
        %v393 = vmul.f32 %v379, %v378
        %v394 = vmul.f32 %v381, %v372
        %v395 = vmul.f32 %v381, %v373
        %v396 = vmul.f32 %v381, %v374
        %v397 = vadd.f32 %v391, %v394
        %v398 = vadd.f32 %v392, %v395
        %v399 = vadd.f32 %v393, %v396
        %403 = vrot.lane.b32.xlu0 %v388, 120
        %v404 = vpop.permute.xlu0 %403
        %405 = vrot.lane.b32.xlu0 %v389, 120
        %v406 = vpop.permute.xlu0 %405
        %407 = vrot.lane.b32.xlu0 %v390, 120
        %v408 = vpop.permute.xlu0 %407
        %v412 = vadd.f32 %v388, %v404
        %v413 = vadd.f32 %v389, %v406
        %v414 = vadd.f32 %v390, %v408
        %418 = vrot.lane.b32.xlu0 %v397, 120
        %v419 = vpop.permute.xlu0 %418
        %420 = vrot.lane.b32.xlu0 %v398, 120
        %v421 = vpop.permute.xlu0 %420
        %422 = vrot.lane.b32.xlu0 %v399, 120
        %v423 = vpop.permute.xlu0 %422
        %v427 = vadd.f32 %v397, %v419
        %v428 = vadd.f32 %v398, %v421
        %v429 = vadd.f32 %v399, %v423
        %v430 = vld [vmem:[%s360] sm:$0xff]
        %v431 = vld [vmem:[%s360 + $0x8] sm:$0xff]
        %v432 = vld [vmem:[%s360 + $0x10] sm:$0xff]
        %v433 = vadd.f32 %v430, %v412
        %v434 = vadd.f32 %v431, %v413
        %v435 = vadd.f32 %v432, %v414
        %vm436 = vcmask 64512
        %437 = vst.msk [vmem:[%s360] sm:$0xff] %vm436, %v433
        %438 = vst.msk [vmem:[%s360 + $0x8] sm:$0xff] %vm436, %v434
        %439 = vst.msk [vmem:[%s360 + $0x10] sm:$0xff] %vm436, %v435
        %s440 = scalar_lea.vmem %s360, 24
        %v441 = vld [vmem:[%s440] sm:$0xff]
        %v442 = vld [vmem:[%s440 + $0x8] sm:$0xff]
        %v443 = vld [vmem:[%s440 + $0x10] sm:$0xff]
        %v444 = vadd.f32 %v441, %v427
        %v445 = vadd.f32 %v442, %v428
        %v446 = vadd.f32 %v443, %v429
        %447 = vst.msk [vmem:[%s440] sm:$0xff] %vm436, %v444
        %448 = vst.msk [vmem:[%s440 + $0x8] sm:$0xff] %vm436, %v445
        %449 = vst.msk [vmem:[%s440 + $0x10] sm:$0xff] %vm436, %v446
        %p450 = scmp.eq.s32.totalorder %s28, 1
        // Predicated region
        $region113: #{defaultnet_forward.6} parent=99 // pred_check
          %p451 = pneg %p450
        $region114: #{defaultnet_forward.6} parent=99 // pred_check_branch
          %453 = sbr.rel (%p451) target = $region116
        $region115: #{defaultnet_forward.6} parent=99 // pred_region
          %s454 = sld [smem:[#allocation3 + %s26]]
          %v455 = vld [vmem:[%s352] sm:$0xff]
          %v456 = vstv %s454
          %v457 = vadd.f32 %v455, %v456
          %v458 = vmul.f32 %v457, 4.0
          %v459 = vrcp.pop %v458
          %v460 = vmul.f32 1.0, %v459
          %v461 = vld [vmem:[%s360] sm:$0xff]
          %v462 = vld [vmem:[%s360 + $0x8] sm:$0xff]
          %v463 = vld [vmem:[%s360 + $0x10] sm:$0xff]
          %v464 = vmul.f32 %v461, %v460
          %v465 = vmul.f32 %v462, %v460
          %v466 = vmul.f32 %v463, %v460
          %467 = vst.msk [vmem:[%s360] sm:$0xff] %vm436, %v464
          %468 = vst.msk [vmem:[%s360 + $0x8] sm:$0xff] %vm436, %v465
          %469 = vst.msk [vmem:[%s360 + $0x10] sm:$0xff] %vm436, %v466
          %v470 = vld [vmem:[%s440] sm:$0xff]
          %v471 = vld [vmem:[%s440 + $0x8] sm:$0xff]
          %v472 = vld [vmem:[%s440 + $0x10] sm:$0xff]
          %v473 = vmul.f32 %v470, %v460
          %v474 = vmul.f32 %v471, %v460
          %v475 = vmul.f32 %v472, %v460
          %476 = vst.msk [vmem:[%s440] sm:$0xff] %vm436, %v473
          %477 = vst.msk [vmem:[%s440 + $0x8] sm:$0xff] %vm436, %v474
          %478 = vst.msk [vmem:[%s440 + $0x10] sm:$0xff] %vm436, %v475
        $region116: #{defaultnet_forward.6} parent=99 // pred_fallthru
          _
        %p479 = scmp.lt.s32.totalorder %s26, 1
        %s480 = scalar_select %p479, %s26, 1
        %p481 = scmp.lt.s32.totalorder %s27, 0
        %s482 = scalar_select %p481, %s27, 0
        %s483 = smul.addr %s480, 6
        %s484 = sadd.s32 %s482, %s483
        %s485 = smul.addr %s484, 8
        %s486 = scalar_lea.vmem %s4, %s485
        // Predicated region
        $region117: #{defaultnet_forward.6} parent=99 // pred_check
          %p487 = pneg %p148
        $region118: #{defaultnet_forward.6} parent=99 // pred_check_branch
          %489 = sbr.rel (%p487) target = $region120
        $region119: #{defaultnet_forward.6} parent=99 // pred_region
          _
        $region120: #{defaultnet_forward.6} parent=99 // pred_fallthru
          _
      $region100: #{defaultnet_forward.6} parent=5 // pred_fallthru
        _
      %p490 = scmp.le.s32.totalorder 2, %s16
      // Predicated region
      $region121: #{defaultnet_forward.6} parent=5 // pred_check
        %p491 = pneg %p490
      $region122: #{defaultnet_forward.6} parent=5 // pred_check_branch
        %493 = sbr.rel (%p491) target = $region124
      $region123: #{defaultnet_forward.6} parent=5 // pred_region
        %s494 = ssub.s32 %s16, 2
        // Predicated region
        $region125: #{defaultnet_forward.6} parent=123 // pred_check
          %p495 = pneg %p154
        $region126: #{defaultnet_forward.6} parent=123 // pred_check_branch
          %497 = sbr.rel (%p495) target = $region128
        $region127: #{defaultnet_forward.6} parent=123 // pred_region
          %p498 = scmp.lt.s32.totalorder %s29, 1
          %s499 = scalar_select %p498, %s29, 1
          %p500 = scmp.lt.s32.totalorder %s30, 0
          %s501 = scalar_select %p500, %s30, 0
          %s502 = smul.addr %s499, 6
          %s503 = sadd.s32 %s501, %s502
          %s504 = smul.addr %s503, 8
          %s505 = scalar_lea.vmem %s4, %s504
        $region128: #{defaultnet_forward.6} parent=123 // pred_fallthru
          _
      $region124: #{defaultnet_forward.6} parent=5 // pred_fallthru
        _
    $region6: #{defaultnet_forward.6} parent=1 // loop_footer
      %s20 = sadd.s32 1, %s16
    $region7: #{defaultnet_forward.6} parent=1 // loop_footer_branch
      %15 = sbr.rel target = $region3
    $region8: #{defaultnet_forward.6} parent=1 // loop_exit
      _

</llo_original>
